<compile_context>
chip_gen: v6e
topology: v6e:2x2x1
jax: 0.10.0
libtpu: 0.0.40
codegen_flags: <defaults>
</compile_context>

<pallas_src>
import math
import functools

import jax
import jax.numpy as jnp
from jax.experimental import pallas as pl
from jax.experimental.pallas import tpu as pltpu


# ------------------------------ fused kernel -------------------------------

def _fused_kernel(x_ref, pos_ref, abias_ref, projT_ref,
                  ln0g_ref, ln0b_ref, qkvwT_ref, qkvb_ref,
                  outwT_ref, outb_ref, ln1g_ref, ln1b_ref,
                  fc1wT_ref, fc1b_ref, fc2wT_ref, fc2b_ref,
                  lnfg_ref, lnfb_ref, o_ref, t_ref, *, num_heads):
    T, D = t_ref.shape
    L = ln0g_ref.shape[0]
    H = num_heads
    Dh = D // H
    embed_scale = math.sqrt(D)
    attn_scale = Dh ** -0.5

    def layer_norm(z, g, b):
        mu = jnp.mean(z, axis=-1, keepdims=True)
        var = jnp.mean(jnp.square(z - mu), axis=-1, keepdims=True)
        return (z - mu) * jax.lax.rsqrt(var + 1e-5) * g + b

    # ---- proj (Conv1d k=1, bias-free) + scaled embedding + positional emb
    h = jnp.dot(x_ref[...], projT_ref[...], preferred_element_type=jnp.float32)
    t_ref[...] = embed_scale * h + pos_ref[...]

    abias = abias_ref[...]          # (T, T) additive mask: 0 same-batch, -1e30 cross-batch

    def layer_body(l, carry):
        t = t_ref[...]

        # --- self-attention block (pre-norm) ---
        tn = layer_norm(t, ln0g_ref[l], ln0b_ref[l])
        qkv = jnp.dot(tn, qkvwT_ref[l],
                      preferred_element_type=jnp.float32) + qkvb_ref[l]
        q = qkv[:, :D] * attn_scale          # PyTorch MHA scales q
        k = qkv[:, D:2 * D]
        v = qkv[:, 2 * D:]

        heads = []
        for hh in range(H):                  # static unroll over 4 heads
            sl = slice(hh * Dh, (hh + 1) * Dh)
            s = jax.lax.dot_general(q[:, sl], k[:, sl],
                                    (((1,), (1,)), ((), ())),
                                    preferred_element_type=jnp.float32)
            s = s + abias                    # block cross-batch attention
            m = jnp.max(s, axis=-1, keepdims=True)
            p = jnp.exp(s - m)
            p = p * pl.reciprocal(jnp.sum(p, axis=-1, keepdims=True),
                                  approx=True)
            heads.append(jnp.dot(p, v[:, sl],
                                 preferred_element_type=jnp.float32))
        a = jnp.concatenate(heads, axis=-1)  # (T, D), lane-concatenated in-kernel

        t = t + jnp.dot(a, outwT_ref[l],
                        preferred_element_type=jnp.float32) + outb_ref[l]

        # --- FFN block (pre-norm) ---
        tn = layer_norm(t, ln1g_ref[l], ln1b_ref[l])
        ff = jnp.maximum(
            jnp.dot(tn, fc1wT_ref[l],
                    preferred_element_type=jnp.float32) + fc1b_ref[l], 0.0)
        t = t + jnp.dot(ff, fc2wT_ref[l],
                        preferred_element_type=jnp.float32) + fc2b_ref[l]

        t_ref[...] = t
        return carry

    jax.lax.fori_loop(0, L, layer_body, 0)

    # ---- final LayerNorm
    o_ref[...] = layer_norm(t_ref[...], lnfg_ref[...], lnfb_ref[...])


# ------------------------------ model pieces -------------------------------

def sinusoidal_pos_emb(seq_len, dim):
    # fairseq-style sinusoidal embedding; positions = padding_idx + 1 + t
    # TODO(synk): fairseq make_positions treats feature-0 == 0 rows as padding;
    # we assume no padded timesteps (positions 1..S).
    half = dim // 2
    freq = jnp.exp(jnp.arange(half, dtype=jnp.float32)
                   * -(math.log(10000.0) / (half - 1)))
    pos = jnp.arange(1, seq_len + 1, dtype=jnp.float32)[:, None]
    ang = pos * freq[None, :]
    emb = jnp.concatenate([jnp.sin(ang), jnp.cos(ang)], axis=1)
    if dim % 2 == 1:
        emb = jnp.concatenate([emb, jnp.zeros((seq_len, 1), jnp.float32)],
                              axis=1)
    return emb  # (S, dim)


def init_params(key, in_size, hidden, num_heads, num_layers):
    """Weights are pre-transposed ONCE here and stacked per layer."""
    del num_heads  # head count is passed statically to the forward
    D, L = hidden, num_layers
    keys = jax.random.split(key, 1 + L)

    def norm(k, shape):
        return 0.02 * jax.random.normal(k, shape, dtype=jnp.float32)

    in_proj_wT, in_proj_b = [], []
    out_wT, out_b = [], []
    fc1_wT, fc1_b = [], []
    fc2_wT, fc2_b = [], []
    for l in range(L):
        k = jax.random.split(keys[1 + l], 8)
        in_proj_wT.append(norm(k[0], (3 * D, D)).T)
        in_proj_b.append(norm(k[1], (1, 3 * D)))
        out_wT.append(norm(k[2], (D, D)).T)
        out_b.append(norm(k[3], (1, D)))
        fc1_wT.append(norm(k[4], (4 * D, D)).T)
        fc1_b.append(norm(k[5], (1, 4 * D)))
        fc2_wT.append(norm(k[6], (D, 4 * D)).T)
        fc2_b.append(norm(k[7], (1, D)))

    return {
        # Conv1d(in_size, hidden, 1, bias=False) weight (hidden, in_size), stored transposed
        'proj_wT': norm(keys[0], (D, in_size)).T,
        'ln0_g': jnp.ones((L, 1, D), jnp.float32),
        'ln0_b': jnp.zeros((L, 1, D), jnp.float32),
        'in_proj_wT': jnp.stack(in_proj_wT),
        'in_proj_b': jnp.stack(in_proj_b),
        'out_wT': jnp.stack(out_wT),
        'out_b': jnp.stack(out_b),
        'ln1_g': jnp.ones((L, 1, D), jnp.float32),
        'ln1_b': jnp.zeros((L, 1, D), jnp.float32),
        'fc1_wT': jnp.stack(fc1_wT),
        'fc1_b': jnp.stack(fc1_b),
        'fc2_wT': jnp.stack(fc2_wT),
        'fc2_b': jnp.stack(fc2_b),
        'lnf_g': jnp.ones((1, D), jnp.float32),
        'lnf_b': jnp.zeros((1, D), jnp.float32),
    }


@functools.partial(jax.jit, static_argnames=("num_heads",))
def my_av_subnet_forward(params, x, num_heads=4):
    """x: (batch, seq, in_size) -> (seq, batch, hidden)."""
    B, S, Din = x.shape
    D = params['proj_wT'].shape[1]
    T = S * B

    # Time-major token stream (S, B, .) flattened -> token index = s*B + b.
    x_tok = x.transpose(1, 0, 2).reshape(T, Din)

    # Positional embedding, broadcast over batch in token layout.
    pos = sinusoidal_pos_emb(S, D)
    pos_tok = jnp.broadcast_to(pos[:, None, :], (S, B, D)).reshape(T, D)

    # Additive attention bias forbidding cross-batch attention in the flat
    # token layout (keeps attention as plain 2-D matmuls inside the kernel).
    tok_b = jnp.arange(T, dtype=jnp.int32) % B
    attn_bias = jnp.where(tok_b[:, None] == tok_b[None, :],
                          0.0, -1e30).astype(jnp.float32)

    out = pl.pallas_call(
        functools.partial(_fused_kernel, num_heads=num_heads),
        out_shape=jax.ShapeDtypeStruct((T, D), jnp.float32),
        scratch_shapes=[pltpu.VMEM((T, D), jnp.float32)],  # resident activation
    )(x_tok, pos_tok, attn_bias, params['proj_wT'],
      params['ln0_g'], params['ln0_b'],
      params['in_proj_wT'], params['in_proj_b'],
      params['out_wT'], params['out_b'],
      params['ln1_g'], params['ln1_b'],
      params['fc1_wT'], params['fc1_b'],
      params['fc2_wT'], params['fc2_b'],
      params['lnf_g'], params['lnf_b'])

    return out.reshape(S, B, D)


# ------------------------- pure-JAX reference check -------------------------

def reference_forward(params, x, num_heads=4):
    B, S, Din = x.shape
    D = params['proj_wT'].shape[1]
    H, Dh = num_heads, params['proj_wT'].shape[1] // num_heads
    L = params['ln0_g'].shape[0]

    def ln(z, g, b):
        mu = z.mean(-1, keepdims=True)
        var = ((z - mu) ** 2).mean(-1, keepdims=True)
        return (z - mu) / jnp.sqrt(var + 1e-5) * g + b

    h = (x.reshape(B * S, Din) @ params['proj_wT']).reshape(B, S, D)
    h = h.transpose(1, 0, 2)                                      # (S, B, D)
    t = math.sqrt(D) * h + sinusoidal_pos_emb(S, D)[:, None, :]
    t = t.reshape(S * B, D)
    for l in range(L):
        tn = ln(t, params['ln0_g'][l], params['ln0_b'][l])
        qkv = tn @ params['in_proj_wT'][l] + params['in_proj_b'][l]
        q, k, v = jnp.split(qkv, 3, axis=-1)
        toh = lambda z: z.reshape(S, B, H, Dh).transpose(1, 2, 0, 3)
        s = jnp.einsum('bhqd,bhkd->bhqk', toh(q) * Dh ** -0.5, toh(k))
        p = jax.nn.softmax(s, axis=-1)
        a = jnp.einsum('bhqk,bhkd->bhqd', p, toh(v))
        a = a.transpose(2, 0, 1, 3).reshape(S * B, D)
        t = t + (a @ params['out_wT'][l] + params['out_b'][l])
        tn = ln(t, params['ln1_g'][l], params['ln1_b'][l])
        ff = jnp.maximum(tn @ params['fc1_wT'][l] + params['fc1_b'][l], 0.0)
        t = t + (ff @ params['fc2_wT'][l] + params['fc2_b'][l])
    t = ln(t, params['lnf_g'], params['lnf_b'])
    return t.reshape(S, B, D)


# ----------------------------------- main -----------------------------------

if __name__ == "__main__":
    B, S, IN_SIZE, HIDDEN = 2, 8, 20, 32
    key = jax.random.PRNGKey(0)
    kp, kx = jax.random.split(key)
    params = init_params(kp, IN_SIZE, HIDDEN, num_heads=4, num_layers=6)
    x = jax.random.normal(kx, (B, S, IN_SIZE), dtype=jnp.float32)

    out = my_av_subnet_forward(params, x)
    out = jax.block_until_ready(out)

    ref = reference_forward(params, x)
    if out.shape != (S, B, HIDDEN):
        raise AssertionError(f"bad output shape {out.shape}")
    # Slightly relaxed tolerance to accommodate the EUP approximate reciprocal
    # used in the in-kernel softmax normalization.
    if not jnp.allclose(out, ref, rtol=2e-3, atol=2e-3):
        raise AssertionError("Pallas output mismatch vs JAX reference")

    print("KERNEL_OK")
</pallas_src>

<mosaic_0001>
module attributes {stable_mosaic.version = 11 : i64} {
  func.func @_fused_kernel(%arg0: memref<16x20xf32, #tpu.memory_space<vmem>>, %arg1: memref<16x32xf32, #tpu.memory_space<vmem>>, %arg2: memref<16x16xf32, #tpu.memory_space<vmem>>, %arg3: memref<20x32xf32, #tpu.memory_space<vmem>>, %arg4: memref<6x1x32xf32, #tpu.memory_space<vmem>>, %arg5: memref<6x1x32xf32, #tpu.memory_space<vmem>>, %arg6: memref<6x32x96xf32, #tpu.memory_space<vmem>>, %arg7: memref<6x1x96xf32, #tpu.memory_space<vmem>>, %arg8: memref<6x32x32xf32, #tpu.memory_space<vmem>>, %arg9: memref<6x1x32xf32, #tpu.memory_space<vmem>>, %arg10: memref<6x1x32xf32, #tpu.memory_space<vmem>>, %arg11: memref<6x1x32xf32, #tpu.memory_space<vmem>>, %arg12: memref<6x32x128xf32, #tpu.memory_space<vmem>>, %arg13: memref<6x1x128xf32, #tpu.memory_space<vmem>>, %arg14: memref<6x128x32xf32, #tpu.memory_space<vmem>>, %arg15: memref<6x1x32xf32, #tpu.memory_space<vmem>>, %arg16: memref<1x32xf32, #tpu.memory_space<vmem>>, %arg17: memref<1x32xf32, #tpu.memory_space<vmem>>, %arg18: memref<16x32xf32, #tpu.memory_space<vmem>>, %arg19: memref<16x32xf32, #tpu.memory_space<vmem>>) attributes {dimension_semantics = [], scalar_prefetch = 0 : i64, scratch_operands = 1 : i64, tpu.core_type = #tpu.core_type<tc>} {
    %c0 = arith.constant 0 : index
    %c0_0 = arith.constant 0 : index
    %0 = vector.load %arg0[%c0, %c0_0] : memref<16x20xf32, #tpu.memory_space<vmem>>, vector<16x20xf32>
    %c0_1 = arith.constant 0 : index
    %c0_2 = arith.constant 0 : index
    %1 = vector.load %arg3[%c0_1, %c0_2] : memref<20x32xf32, #tpu.memory_space<vmem>>, vector<20x32xf32>
    %cst = arith.constant dense<0.000000e+00> : vector<16x32xf32>
    %2 = tpu.matmul %0, %1, %cst {dimension_numbers = #tpu.dot_dimension_numbers<[1], [0], [0], [1], [0, 0, 1, 1], [], []>} : vector<16x20xf32>, vector<20x32xf32>, vector<16x32xf32> -> vector<16x32xf32>
    %cst_3 = arith.constant 5.65685415 : f32
    %3 = vector.broadcast %cst_3 : f32 to vector<16x32xf32>
    %4 = arith.mulf %3, %2 : vector<16x32xf32>
    %c0_4 = arith.constant 0 : index
    %c0_5 = arith.constant 0 : index
    %5 = vector.load %arg1[%c0_4, %c0_5] : memref<16x32xf32, #tpu.memory_space<vmem>>, vector<16x32xf32>
    %6 = arith.addf %4, %5 : vector<16x32xf32>
    %c0_6 = arith.constant 0 : index
    %c0_7 = arith.constant 0 : index
    %7 = vector.load %arg19[%c0_6, %c0_7] : memref<16x32xf32, #tpu.memory_space<vmem>>, vector<16x32xf32>
    tpu.vector_store %arg19[%c0_6, %c0_7], %6 {strides = array<i32>} : memref<16x32xf32, #tpu.memory_space<vmem>>, vector<16x32xf32>,
    %c0_8 = arith.constant 0 : index
    %c0_9 = arith.constant 0 : index
    %8 = vector.load %arg2[%c0_8, %c0_9] : memref<16x16xf32, #tpu.memory_space<vmem>>, vector<16x16xf32>
    %c0_i32 = arith.constant 0 : i32
    %c6_i32 = arith.constant 6 : i32
    %9 = arith.addi %c0_i32, %c6_i32 : i32
    %c1_i32 = arith.constant 1 : i32
    scf.for %arg20 = %c0_i32 to %9 step %c1_i32  : i32 {
      %c0_24 = arith.constant 0 : index
      %c0_25 = arith.constant 0 : index
      %36 = vector.load %arg19[%c0_24, %c0_25] : memref<16x32xf32, #tpu.memory_space<vmem>>, vector<16x32xf32>
      %37 = arith.index_cast %arg20 : i32 to index
      %c0_26 = arith.constant 0 : index
      %c0_27 = arith.constant 0 : index
      %38 = vector.load %arg4[%37, %c0_26, %c0_27] : memref<6x1x32xf32, #tpu.memory_space<vmem>>, vector<1x1x32xf32>
      %39 = vector.shape_cast %38 : vector<1x1x32xf32> to vector<1x32xf32>
      %40 = arith.index_cast %arg20 : i32 to index
      %c0_28 = arith.constant 0 : index
      %c0_29 = arith.constant 0 : index
      %41 = vector.load %arg5[%40, %c0_28, %c0_29] : memref<6x1x32xf32, #tpu.memory_space<vmem>>, vector<1x1x32xf32>
      %42 = vector.shape_cast %41 : vector<1x1x32xf32> to vector<1x32xf32>
      %cst_30 = arith.constant dense<0.000000e+00> : vector<16xf32>
      %43 = vector.multi_reduction <add>, %36, %cst_30 [1] : vector<16x32xf32> to vector<16xf32>
      %44 = vector.shape_cast %43 : vector<16xf32> to vector<16x1xf32>
      %cst_31 = arith.constant 3.200000e+01 : f32
      %45 = vector.broadcast %cst_31 : f32 to vector<16x1xf32>
      %46 = arith.divf %44, %45 : vector<16x1xf32>
      %47 = vector.broadcast %46 : vector<16x1xf32> to vector<16x32xf32>
      %48 = arith.subf %36, %47 : vector<16x32xf32>
      %49 = arith.mulf %48, %48 : vector<16x32xf32>
      %cst_32 = arith.constant dense<0.000000e+00> : vector<16xf32>
      %50 = vector.multi_reduction <add>, %49, %cst_32 [1] : vector<16x32xf32> to vector<16xf32>
      %51 = vector.shape_cast %50 : vector<16xf32> to vector<16x1xf32>
      %cst_33 = arith.constant 3.200000e+01 : f32
      %52 = vector.broadcast %cst_33 : f32 to vector<16x1xf32>
      %53 = arith.divf %51, %52 : vector<16x1xf32>
      %54 = vector.broadcast %46 : vector<16x1xf32> to vector<16x32xf32>
      %55 = arith.subf %36, %54 : vector<16x32xf32>
      %cst_34 = arith.constant 9.99999974E-6 : f32
      %56 = vector.broadcast %cst_34 : f32 to vector<16x1xf32>
      %57 = arith.addf %53, %56 : vector<16x1xf32>
      %58 = math.rsqrt %57 : vector<16x1xf32>
      %59 = vector.broadcast %58 : vector<16x1xf32> to vector<16x32xf32>
      %60 = arith.mulf %55, %59 : vector<16x32xf32>
      %61 = vector.broadcast %39 : vector<1x32xf32> to vector<16x32xf32>
      %62 = arith.mulf %60, %61 : vector<16x32xf32>
      %63 = vector.broadcast %42 : vector<1x32xf32> to vector<16x32xf32>
      %64 = arith.addf %62, %63 : vector<16x32xf32>
      %65 = arith.index_cast %arg20 : i32 to index
      %c0_35 = arith.constant 0 : index
      %c0_36 = arith.constant 0 : index
      %66 = vector.load %arg6[%65, %c0_35, %c0_36] : memref<6x32x96xf32, #tpu.memory_space<vmem>>, vector<1x32x96xf32>
      %67 = vector.shape_cast %66 : vector<1x32x96xf32> to vector<32x96xf32>
      %cst_37 = arith.constant dense<0.000000e+00> : vector<16x96xf32>
      %68 = tpu.matmul %64, %67, %cst_37 {dimension_numbers = #tpu.dot_dimension_numbers<[1], [0], [0], [1], [0, 0, 1, 1], [], []>} : vector<16x32xf32>, vector<32x96xf32>, vector<16x96xf32> -> vector<16x96xf32>
      %69 = arith.index_cast %arg20 : i32 to index
      %c0_38 = arith.constant 0 : index
      %c0_39 = arith.constant 0 : index
      %70 = vector.load %arg7[%69, %c0_38, %c0_39] : memref<6x1x96xf32, #tpu.memory_space<vmem>>, vector<1x1x96xf32>
      %71 = vector.shape_cast %70 : vector<1x1x96xf32> to vector<1x96xf32>
      %72 = vector.broadcast %71 : vector<1x96xf32> to vector<16x96xf32>
      %73 = arith.addf %68, %72 : vector<16x96xf32>
      %74 = vector.extract_strided_slice %73 {offsets = [0, 0], sizes = [16, 32], strides = [1, 1]} : vector<16x96xf32> to vector<16x32xf32>
      %cst_40 = arith.constant 0.353553385 : f32
      %75 = vector.broadcast %cst_40 : f32 to vector<16x32xf32>
      %76 = arith.mulf %74, %75 : vector<16x32xf32>
      %77 = vector.extract_strided_slice %73 {offsets = [0, 32], sizes = [16, 32], strides = [1, 1]} : vector<16x96xf32> to vector<16x32xf32>
      %78 = vector.extract_strided_slice %73 {offsets = [0, 64], sizes = [16, 32], strides = [1, 1]} : vector<16x96xf32> to vector<16x32xf32>
      %79 = vector.extract_strided_slice %76 {offsets = [0, 0], sizes = [16, 8], strides = [1, 1]} : vector<16x32xf32> to vector<16x8xf32>
      %80 = vector.extract_strided_slice %77 {offsets = [0, 0], sizes = [16, 8], strides = [1, 1]} : vector<16x32xf32> to vector<16x8xf32>
      %cst_41 = arith.constant dense<0.000000e+00> : vector<16x16xf32>
      %81 = tpu.matmul %79, %80, %cst_41 {dimension_numbers = #tpu.dot_dimension_numbers<[1], [1], [0], [0], [0, 0, 1, 0], [], []>} : vector<16x8xf32>, vector<16x8xf32>, vector<16x16xf32> -> vector<16x16xf32>
      %82 = arith.addf %81, %8 : vector<16x16xf32>
      %cst_42 = arith.constant dense<0xFF800000> : vector<16xf32>
      %83 = vector.multi_reduction <maximumf>, %82, %cst_42 [1] : vector<16x16xf32> to vector<16xf32>
      %84 = vector.shape_cast %83 : vector<16xf32> to vector<16x1xf32>
      %85 = vector.broadcast %84 : vector<16x1xf32> to vector<16x16xf32>
      %86 = arith.subf %82, %85 : vector<16x16xf32>
      %87 = math.exp %86 : vector<16x16xf32>
      %cst_43 = arith.constant dense<0.000000e+00> : vector<16xf32>
      %88 = vector.multi_reduction <add>, %87, %cst_43 [1] : vector<16x16xf32> to vector<16xf32>
      %89 = vector.shape_cast %88 : vector<16xf32> to vector<16x1xf32>
      %90 = tpu.reciprocal %89 {approx = true} : vector<16x1xf32> -> vector<16x1xf32>
      %91 = vector.broadcast %90 : vector<16x1xf32> to vector<16x16xf32>
      %92 = arith.mulf %87, %91 : vector<16x16xf32>
      %93 = vector.extract_strided_slice %78 {offsets = [0, 0], sizes = [16, 8], strides = [1, 1]} : vector<16x32xf32> to vector<16x8xf32>
      %cst_44 = arith.constant dense<0.000000e+00> : vector<16x8xf32>
      %94 = tpu.matmul %92, %93, %cst_44 {dimension_numbers = #tpu.dot_dimension_numbers<[1], [0], [0], [1], [0, 0, 1, 1], [], []>} : vector<16x16xf32>, vector<16x8xf32>, vector<16x8xf32> -> vector<16x8xf32>
      %95 = vector.extract_strided_slice %76 {offsets = [0, 8], sizes = [16, 8], strides = [1, 1]} : vector<16x32xf32> to vector<16x8xf32>
      %96 = vector.extract_strided_slice %77 {offsets = [0, 8], sizes = [16, 8], strides = [1, 1]} : vector<16x32xf32> to vector<16x8xf32>
      %cst_45 = arith.constant dense<0.000000e+00> : vector<16x16xf32>
      %97 = tpu.matmul %95, %96, %cst_45 {dimension_numbers = #tpu.dot_dimension_numbers<[1], [1], [0], [0], [0, 0, 1, 0], [], []>} : vector<16x8xf32>, vector<16x8xf32>, vector<16x16xf32> -> vector<16x16xf32>
      %98 = arith.addf %97, %8 : vector<16x16xf32>
      %cst_46 = arith.constant dense<0xFF800000> : vector<16xf32>
      %99 = vector.multi_reduction <maximumf>, %98, %cst_46 [1] : vector<16x16xf32> to vector<16xf32>
      %100 = vector.shape_cast %99 : vector<16xf32> to vector<16x1xf32>
      %101 = vector.broadcast %100 : vector<16x1xf32> to vector<16x16xf32>
      %102 = arith.subf %98, %101 : vector<16x16xf32>
      %103 = math.exp %102 : vector<16x16xf32>
      %cst_47 = arith.constant dense<0.000000e+00> : vector<16xf32>
      %104 = vector.multi_reduction <add>, %103, %cst_47 [1] : vector<16x16xf32> to vector<16xf32>
      %105 = vector.shape_cast %104 : vector<16xf32> to vector<16x1xf32>
      %106 = tpu.reciprocal %105 {approx = true} : vector<16x1xf32> -> vector<16x1xf32>
      %107 = vector.broadcast %106 : vector<16x1xf32> to vector<16x16xf32>
      %108 = arith.mulf %103, %107 : vector<16x16xf32>
      %109 = vector.extract_strided_slice %78 {offsets = [0, 8], sizes = [16, 8], strides = [1, 1]} : vector<16x32xf32> to vector<16x8xf32>
      %cst_48 = arith.constant dense<0.000000e+00> : vector<16x8xf32>
      %110 = tpu.matmul %108, %109, %cst_48 {dimension_numbers = #tpu.dot_dimension_numbers<[1], [0], [0], [1], [0, 0, 1, 1], [], []>} : vector<16x16xf32>, vector<16x8xf32>, vector<16x8xf32> -> vector<16x8xf32>
      %111 = vector.extract_strided_slice %76 {offsets = [0, 16], sizes = [16, 8], strides = [1, 1]} : vector<16x32xf32> to vector<16x8xf32>
      %112 = vector.extract_strided_slice %77 {offsets = [0, 16], sizes = [16, 8], strides = [1, 1]} : vector<16x32xf32> to vector<16x8xf32>
      %cst_49 = arith.constant dense<0.000000e+00> : vector<16x16xf32>
      %113 = tpu.matmul %111, %112, %cst_49 {dimension_numbers = #tpu.dot_dimension_numbers<[1], [1], [0], [0], [0, 0, 1, 0], [], []>} : vector<16x8xf32>, vector<16x8xf32>, vector<16x16xf32> -> vector<16x16xf32>
      %114 = arith.addf %113, %8 : vector<16x16xf32>
      %cst_50 = arith.constant dense<0xFF800000> : vector<16xf32>
      %115 = vector.multi_reduction <maximumf>, %114, %cst_50 [1] : vector<16x16xf32> to vector<16xf32>
      %116 = vector.shape_cast %115 : vector<16xf32> to vector<16x1xf32>
      %117 = vector.broadcast %116 : vector<16x1xf32> to vector<16x16xf32>
      %118 = arith.subf %114, %117 : vector<16x16xf32>
      %119 = math.exp %118 : vector<16x16xf32>
      %cst_51 = arith.constant dense<0.000000e+00> : vector<16xf32>
      %120 = vector.multi_reduction <add>, %119, %cst_51 [1] : vector<16x16xf32> to vector<16xf32>
      %121 = vector.shape_cast %120 : vector<16xf32> to vector<16x1xf32>
      %122 = tpu.reciprocal %121 {approx = true} : vector<16x1xf32> -> vector<16x1xf32>
      %123 = vector.broadcast %122 : vector<16x1xf32> to vector<16x16xf32>
      %124 = arith.mulf %119, %123 : vector<16x16xf32>
      %125 = vector.extract_strided_slice %78 {offsets = [0, 16], sizes = [16, 8], strides = [1, 1]} : vector<16x32xf32> to vector<16x8xf32>
      %cst_52 = arith.constant dense<0.000000e+00> : vector<16x8xf32>
      %126 = tpu.matmul %124, %125, %cst_52 {dimension_numbers = #tpu.dot_dimension_numbers<[1], [0], [0], [1], [0, 0, 1, 1], [], []>} : vector<16x16xf32>, vector<16x8xf32>, vector<16x8xf32> -> vector<16x8xf32>
      %127 = vector.extract_strided_slice %76 {offsets = [0, 24], sizes = [16, 8], strides = [1, 1]} : vector<16x32xf32> to vector<16x8xf32>
      %128 = vector.extract_strided_slice %77 {offsets = [0, 24], sizes = [16, 8], strides = [1, 1]} : vector<16x32xf32> to vector<16x8xf32>
      %cst_53 = arith.constant dense<0.000000e+00> : vector<16x16xf32>
      %129 = tpu.matmul %127, %128, %cst_53 {dimension_numbers = #tpu.dot_dimension_numbers<[1], [1], [0], [0], [0, 0, 1, 0], [], []>} : vector<16x8xf32>, vector<16x8xf32>, vector<16x16xf32> -> vector<16x16xf32>
      %130 = arith.addf %129, %8 : vector<16x16xf32>
      %cst_54 = arith.constant dense<0xFF800000> : vector<16xf32>
      %131 = vector.multi_reduction <maximumf>, %130, %cst_54 [1] : vector<16x16xf32> to vector<16xf32>
      %132 = vector.shape_cast %131 : vector<16xf32> to vector<16x1xf32>
      %133 = vector.broadcast %132 : vector<16x1xf32> to vector<16x16xf32>
      %134 = arith.subf %130, %133 : vector<16x16xf32>
      %135 = math.exp %134 : vector<16x16xf32>
      %cst_55 = arith.constant dense<0.000000e+00> : vector<16xf32>
      %136 = vector.multi_reduction <add>, %135, %cst_55 [1] : vector<16x16xf32> to vector<16xf32>
      %137 = vector.shape_cast %136 : vector<16xf32> to vector<16x1xf32>
      %138 = tpu.reciprocal %137 {approx = true} : vector<16x1xf32> -> vector<16x1xf32>
      %139 = vector.broadcast %138 : vector<16x1xf32> to vector<16x16xf32>
      %140 = arith.mulf %135, %139 : vector<16x16xf32>
      %141 = vector.extract_strided_slice %78 {offsets = [0, 24], sizes = [16, 8], strides = [1, 1]} : vector<16x32xf32> to vector<16x8xf32>
      %cst_56 = arith.constant dense<0.000000e+00> : vector<16x8xf32>
      %142 = tpu.matmul %140, %141, %cst_56 {dimension_numbers = #tpu.dot_dimension_numbers<[1], [0], [0], [1], [0, 0, 1, 1], [], []>} : vector<16x16xf32>, vector<16x8xf32>, vector<16x8xf32> -> vector<16x8xf32>
      %143 = tpu.concatenate %94, %110, %126, %142 in 1 : vector<16x8xf32>, vector<16x8xf32>, vector<16x8xf32>, vector<16x8xf32> -> vector<16x32xf32>
      %144 = arith.index_cast %arg20 : i32 to index
      %c0_57 = arith.constant 0 : index
      %c0_58 = arith.constant 0 : index
      %145 = vector.load %arg8[%144, %c0_57, %c0_58] : memref<6x32x32xf32, #tpu.memory_space<vmem>>, vector<1x32x32xf32>
      %146 = vector.shape_cast %145 : vector<1x32x32xf32> to vector<32x32xf32>
      %cst_59 = arith.constant dense<0.000000e+00> : vector<16x32xf32>
      %147 = tpu.matmul %143, %146, %cst_59 {dimension_numbers = #tpu.dot_dimension_numbers<[1], [0], [0], [1], [0, 0, 1, 1], [], []>} : vector<16x32xf32>, vector<32x32xf32>, vector<16x32xf32> -> vector<16x32xf32>
      %148 = arith.addf %36, %147 : vector<16x32xf32>
      %149 = arith.index_cast %arg20 : i32 to index
      %c0_60 = arith.constant 0 : index
      %c0_61 = arith.constant 0 : index
      %150 = vector.load %arg9[%149, %c0_60, %c0_61] : memref<6x1x32xf32, #tpu.memory_space<vmem>>, vector<1x1x32xf32>
      %151 = vector.shape_cast %150 : vector<1x1x32xf32> to vector<1x32xf32>
      %152 = vector.broadcast %151 : vector<1x32xf32> to vector<16x32xf32>
      %153 = arith.addf %148, %152 : vector<16x32xf32>
      %154 = arith.index_cast %arg20 : i32 to index
      %c0_62 = arith.constant 0 : index
      %c0_63 = arith.constant 0 : index
      %155 = vector.load %arg10[%154, %c0_62, %c0_63] : memref<6x1x32xf32, #tpu.memory_space<vmem>>, vector<1x1x32xf32>
      %156 = vector.shape_cast %155 : vector<1x1x32xf32> to vector<1x32xf32>
      %157 = arith.index_cast %arg20 : i32 to index
      %c0_64 = arith.constant 0 : index
      %c0_65 = arith.constant 0 : index
      %158 = vector.load %arg11[%157, %c0_64, %c0_65] : memref<6x1x32xf32, #tpu.memory_space<vmem>>, vector<1x1x32xf32>
      %159 = vector.shape_cast %158 : vector<1x1x32xf32> to vector<1x32xf32>
      %cst_66 = arith.constant dense<0.000000e+00> : vector<16xf32>
      %160 = vector.multi_reduction <add>, %153, %cst_66 [1] : vector<16x32xf32> to vector<16xf32>
      %161 = vector.shape_cast %160 : vector<16xf32> to vector<16x1xf32>
      %cst_67 = arith.constant 3.200000e+01 : f32
      %162 = vector.broadcast %cst_67 : f32 to vector<16x1xf32>
      %163 = arith.divf %161, %162 : vector<16x1xf32>
      %164 = vector.broadcast %163 : vector<16x1xf32> to vector<16x32xf32>
      %165 = arith.subf %153, %164 : vector<16x32xf32>
      %166 = arith.mulf %165, %165 : vector<16x32xf32>
      %cst_68 = arith.constant dense<0.000000e+00> : vector<16xf32>
      %167 = vector.multi_reduction <add>, %166, %cst_68 [1] : vector<16x32xf32> to vector<16xf32>
      %168 = vector.shape_cast %167 : vector<16xf32> to vector<16x1xf32>
      %cst_69 = arith.constant 3.200000e+01 : f32
      %169 = vector.broadcast %cst_69 : f32 to vector<16x1xf32>
      %170 = arith.divf %168, %169 : vector<16x1xf32>
      %171 = vector.broadcast %163 : vector<16x1xf32> to vector<16x32xf32>
      %172 = arith.subf %153, %171 : vector<16x32xf32>
      %cst_70 = arith.constant 9.99999974E-6 : f32
      %173 = vector.broadcast %cst_70 : f32 to vector<16x1xf32>
      %174 = arith.addf %170, %173 : vector<16x1xf32>
      %175 = math.rsqrt %174 : vector<16x1xf32>
      %176 = vector.broadcast %175 : vector<16x1xf32> to vector<16x32xf32>
      %177 = arith.mulf %172, %176 : vector<16x32xf32>
      %178 = vector.broadcast %156 : vector<1x32xf32> to vector<16x32xf32>
      %179 = arith.mulf %177, %178 : vector<16x32xf32>
      %180 = vector.broadcast %159 : vector<1x32xf32> to vector<16x32xf32>
      %181 = arith.addf %179, %180 : vector<16x32xf32>
      %182 = arith.index_cast %arg20 : i32 to index
      %c0_71 = arith.constant 0 : index
      %c0_72 = arith.constant 0 : index
      %183 = vector.load %arg12[%182, %c0_71, %c0_72] : memref<6x32x128xf32, #tpu.memory_space<vmem>>, vector<1x32x128xf32>
      %184 = vector.shape_cast %183 : vector<1x32x128xf32> to vector<32x128xf32>
      %cst_73 = arith.constant dense<0.000000e+00> : vector<16x128xf32>
      %185 = tpu.matmul %181, %184, %cst_73 {dimension_numbers = #tpu.dot_dimension_numbers<[1], [0], [0], [1], [0, 0, 1, 1], [], []>} : vector<16x32xf32>, vector<32x128xf32>, vector<16x128xf32> -> vector<16x128xf32>
      %186 = arith.index_cast %arg20 : i32 to index
      %c0_74 = arith.constant 0 : index
      %c0_75 = arith.constant 0 : index
      %187 = vector.load %arg13[%186, %c0_74, %c0_75] : memref<6x1x128xf32, #tpu.memory_space<vmem>>, vector<1x1x128xf32>
      %188 = vector.shape_cast %187 : vector<1x1x128xf32> to vector<1x128xf32>
      %189 = vector.broadcast %188 : vector<1x128xf32> to vector<16x128xf32>
      %190 = arith.addf %185, %189 : vector<16x128xf32>
      %cst_76 = arith.constant 0.000000e+00 : f32
      %191 = vector.broadcast %cst_76 : f32 to vector<16x128xf32>
      %192 = arith.maximumf %190, %191 : vector<16x128xf32>
      %193 = arith.index_cast %arg20 : i32 to index
      %c0_77 = arith.constant 0 : index
      %c0_78 = arith.constant 0 : index
      %194 = vector.load %arg14[%193, %c0_77, %c0_78] : memref<6x128x32xf32, #tpu.memory_space<vmem>>, vector<1x128x32xf32>
      %195 = vector.shape_cast %194 : vector<1x128x32xf32> to vector<128x32xf32>
      %cst_79 = arith.constant dense<0.000000e+00> : vector<16x32xf32>
      %196 = tpu.matmul %192, %195, %cst_79 {dimension_numbers = #tpu.dot_dimension_numbers<[1], [0], [0], [1], [0, 0, 1, 1], [], []>} : vector<16x128xf32>, vector<128x32xf32>, vector<16x32xf32> -> vector<16x32xf32>
      %197 = arith.addf %153, %196 : vector<16x32xf32>
      %198 = arith.index_cast %arg20 : i32 to index
      %c0_80 = arith.constant 0 : index
      %c0_81 = arith.constant 0 : index
      %199 = vector.load %arg15[%198, %c0_80, %c0_81] : memref<6x1x32xf32, #tpu.memory_space<vmem>>, vector<1x1x32xf32>
      %200 = vector.shape_cast %199 : vector<1x1x32xf32> to vector<1x32xf32>
      %201 = vector.broadcast %200 : vector<1x32xf32> to vector<16x32xf32>
      %202 = arith.addf %197, %201 : vector<16x32xf32>
      %c0_82 = arith.constant 0 : index
      %c0_83 = arith.constant 0 : index
      %203 = vector.load %arg19[%c0_82, %c0_83] : memref<16x32xf32, #tpu.memory_space<vmem>>, vector<16x32xf32>
      tpu.vector_store %arg19[%c0_82, %c0_83], %202 {strides = array<i32>} : memref<16x32xf32, #tpu.memory_space<vmem>>, vector<16x32xf32>,
    }
    %c6_i32_10 = arith.constant 6 : i32
    %c0_11 = arith.constant 0 : index
    %c0_12 = arith.constant 0 : index
    %10 = vector.load %arg19[%c0_11, %c0_12] : memref<16x32xf32, #tpu.memory_space<vmem>>, vector<16x32xf32>
    %c0_13 = arith.constant 0 : index
    %c0_14 = arith.constant 0 : index
    %11 = vector.load %arg16[%c0_13, %c0_14] : memref<1x32xf32, #tpu.memory_space<vmem>>, vector<1x32xf32>
    %c0_15 = arith.constant 0 : index
    %c0_16 = arith.constant 0 : index
    %12 = vector.load %arg17[%c0_15, %c0_16] : memref<1x32xf32, #tpu.memory_space<vmem>>, vector<1x32xf32>
    %cst_17 = arith.constant dense<0.000000e+00> : vector<16xf32>
    %13 = vector.multi_reduction <add>, %10, %cst_17 [1] : vector<16x32xf32> to vector<16xf32>
    %14 = vector.shape_cast %13 : vector<16xf32> to vector<16x1xf32>
    %cst_18 = arith.constant 3.200000e+01 : f32
    %15 = vector.broadcast %cst_18 : f32 to vector<16x1xf32>
    %16 = arith.divf %14, %15 : vector<16x1xf32>
    %17 = vector.broadcast %16 : vector<16x1xf32> to vector<16x32xf32>
    %18 = arith.subf %10, %17 : vector<16x32xf32>
    %19 = arith.mulf %18, %18 : vector<16x32xf32>
    %cst_19 = arith.constant dense<0.000000e+00> : vector<16xf32>
    %20 = vector.multi_reduction <add>, %19, %cst_19 [1] : vector<16x32xf32> to vector<16xf32>
    %21 = vector.shape_cast %20 : vector<16xf32> to vector<16x1xf32>
    %cst_20 = arith.constant 3.200000e+01 : f32
    %22 = vector.broadcast %cst_20 : f32 to vector<16x1xf32>
    %23 = arith.divf %21, %22 : vector<16x1xf32>
    %24 = vector.broadcast %16 : vector<16x1xf32> to vector<16x32xf32>
    %25 = arith.subf %10, %24 : vector<16x32xf32>
    %cst_21 = arith.constant 9.99999974E-6 : f32
    %26 = vector.broadcast %cst_21 : f32 to vector<16x1xf32>
    %27 = arith.addf %23, %26 : vector<16x1xf32>
    %28 = math.rsqrt %27 : vector<16x1xf32>
    %29 = vector.broadcast %28 : vector<16x1xf32> to vector<16x32xf32>
    %30 = arith.mulf %25, %29 : vector<16x32xf32>
    %31 = vector.broadcast %11 : vector<1x32xf32> to vector<16x32xf32>
    %32 = arith.mulf %30, %31 : vector<16x32xf32>
    %33 = vector.broadcast %12 : vector<1x32xf32> to vector<16x32xf32>
    %34 = arith.addf %32, %33 : vector<16x32xf32>
    %c0_22 = arith.constant 0 : index
    %c0_23 = arith.constant 0 : index
    %35 = vector.load %arg18[%c0_22, %c0_23] : memref<16x32xf32, #tpu.memory_space<vmem>>, vector<16x32xf32>
    tpu.vector_store %arg18[%c0_22, %c0_23], %34 {strides = array<i32>} : memref<16x32xf32, #tpu.memory_space<vmem>>, vector<16x32xf32>,
    return
  }
}

</mosaic_0001>

<llo_original>
// kernel: my_av_subnet_forward.1
$region0: #{my_av_subnet_forward.1}
  #allocation0 [shape = 'u32[]', space=smem, size = 0x4, offset = 0x4, fixed_abs, tag = 'smem constant byte address 0x4 - core index']
  #allocation1 [shape = 'u32[144,128]{1,0:T(1,128)}', space=vmem, size = 0x12000, scoped, tag = 'internal scratch']
  #allocation2 [shape = 'f32[16,32]{1,0:T(8,128)}', space=vmem, size = 0x2000, scoped, tag = 'scratch operand']
  %s0 = inlined_call_operand.vmem [shape: f32[16,20], index: 0, kind: input, shape index: {}]
  %s1 = inlined_call_operand.vmem [shape: f32[16,32], index: 1, kind: input, shape index: {}]
  %s2 = inlined_call_operand.vmem [shape: f32[16,16], index: 2, kind: input, shape index: {}]
  %s3 = inlined_call_operand.vmem [shape: f32[20,32], index: 3, kind: input, shape index: {}]
  %s4 = inlined_call_operand.vmem [shape: f32[6,1,32], index: 4, kind: input, shape index: {}]
  %s5 = inlined_call_operand.vmem [shape: f32[6,1,32], index: 5, kind: input, shape index: {}]
  %s6 = inlined_call_operand.vmem [shape: f32[6,32,96], index: 6, kind: input, shape index: {}]
  %s7 = inlined_call_operand.vmem [shape: f32[6,1,96], index: 7, kind: input, shape index: {}]
  %s8 = inlined_call_operand.vmem [shape: f32[6,32,32], index: 8, kind: input, shape index: {}]
  %s9 = inlined_call_operand.vmem [shape: f32[6,1,32], index: 9, kind: input, shape index: {}]
  %s10 = inlined_call_operand.vmem [shape: f32[6,1,32], index: 10, kind: input, shape index: {}]
  %s11 = inlined_call_operand.vmem [shape: f32[6,1,32], index: 11, kind: input, shape index: {}]
  %s12 = inlined_call_operand.vmem [shape: f32[6,32,128], index: 12, kind: input, shape index: {}]
  %s13 = inlined_call_operand.vmem [shape: f32[6,1,128], index: 13, kind: input, shape index: {}]
  %s14 = inlined_call_operand.vmem [shape: f32[6,128,32], index: 14, kind: input, shape index: {}]
  %s15 = inlined_call_operand.vmem [shape: f32[6,1,32], index: 15, kind: input, shape index: {}]
  %s16 = inlined_call_operand.vmem [shape: f32[1,32], index: 16, kind: input, shape index: {}]
  %s17 = inlined_call_operand.vmem [shape: f32[1,32], index: 17, kind: input, shape index: {}]
  %s18 = inlined_call_operand.hbm [shape: f32[16,32], index: 18, kind: output, shape index: {}]
  %s19 = sld [smem:[#allocation0]]
  $region89: #{my_av_subnet_forward.1} parent=0
    _
  %s21 = ssub.s32 1, %s19
  %s22 = scalar_select 0, %s21, %s19
  $region1: #{my_av_subnet_forward.1} parent=0
    #allocation3 [shape = 'u8[8192]{0}', space=vmem, size = 0x2000, scoped, tag = 'output window, operand 0, single buffered']
    #allocation4 [shape = 's32[1]{0}', space=sflag, size = 0x4, scoped, tag = 'scoped memory for my_av_subnet_forward.1']
    %23 = vsyncpa [#allocation4], 0
    // Predicated region
    $region2: #{my_av_subnet_forward.1} parent=1 // pred_check
      _
    $region3: #{my_av_subnet_forward.1} parent=1 // pred_check_branch
      %25 = sbr.rel (0) target = $region5
    $region4: #{my_av_subnet_forward.1} parent=1 // pred_region
      _
    $region5: #{my_av_subnet_forward.1} parent=1 // pred_fallthru
      _
    // Predicated region
    $region6: #{my_av_subnet_forward.1} parent=1 // pred_check
      _
    $region7: #{my_av_subnet_forward.1} parent=1 // pred_check_branch
      %27 = sbr.rel (0) target = $region9
    $region8: #{my_av_subnet_forward.1} parent=1 // pred_region
      _
    $region9: #{my_av_subnet_forward.1} parent=1 // pred_fallthru
      _
    // Predicated region
    $region10: #{my_av_subnet_forward.1} parent=1 // pred_check
      _
    $region11: #{my_av_subnet_forward.1} parent=1 // pred_check_branch
      %29 = sbr.rel (0) target = $region13
    $region12: #{my_av_subnet_forward.1} parent=1 // pred_region
      _
    $region13: #{my_av_subnet_forward.1} parent=1 // pred_fallthru
      _
    // Predicated region
    $region14: #{my_av_subnet_forward.1} parent=1 // pred_check
      _
    $region15: #{my_av_subnet_forward.1} parent=1 // pred_check_branch
      %31 = sbr.rel (0) target = $region17
    $region16: #{my_av_subnet_forward.1} parent=1 // pred_region
      _
    $region17: #{my_av_subnet_forward.1} parent=1 // pred_fallthru
      _
    // Predicated region
    $region18: #{my_av_subnet_forward.1} parent=1 // pred_check
      _
    $region19: #{my_av_subnet_forward.1} parent=1 // pred_check_branch
      %33 = sbr.rel (0) target = $region21
    $region20: #{my_av_subnet_forward.1} parent=1 // pred_region
      _
    $region21: #{my_av_subnet_forward.1} parent=1 // pred_fallthru
      _
    // Predicated region
    $region22: #{my_av_subnet_forward.1} parent=1 // pred_check
      _
    $region23: #{my_av_subnet_forward.1} parent=1 // pred_check_branch
      %35 = sbr.rel (0) target = $region25
    $region24: #{my_av_subnet_forward.1} parent=1 // pred_region
      _
    $region25: #{my_av_subnet_forward.1} parent=1 // pred_fallthru
      _
    // Predicated region
    $region26: #{my_av_subnet_forward.1} parent=1 // pred_check
      _
    $region27: #{my_av_subnet_forward.1} parent=1 // pred_check_branch
      %37 = sbr.rel (0) target = $region29
    $region28: #{my_av_subnet_forward.1} parent=1 // pred_region
      _
    $region29: #{my_av_subnet_forward.1} parent=1 // pred_fallthru
      _
    // Predicated region
    $region30: #{my_av_subnet_forward.1} parent=1 // pred_check
      _
    $region31: #{my_av_subnet_forward.1} parent=1 // pred_check_branch
      %39 = sbr.rel (0) target = $region33
    $region32: #{my_av_subnet_forward.1} parent=1 // pred_region
      _
    $region33: #{my_av_subnet_forward.1} parent=1 // pred_fallthru
      _
    // Predicated region
    $region34: #{my_av_subnet_forward.1} parent=1 // pred_check
      _
    $region35: #{my_av_subnet_forward.1} parent=1 // pred_check_branch
      %41 = sbr.rel (0) target = $region37
    $region36: #{my_av_subnet_forward.1} parent=1 // pred_region
      _
    $region37: #{my_av_subnet_forward.1} parent=1 // pred_fallthru
      _
    // Predicated region
    $region38: #{my_av_subnet_forward.1} parent=1 // pred_check
      _
    $region39: #{my_av_subnet_forward.1} parent=1 // pred_check_branch
      %43 = sbr.rel (0) target = $region41
    $region40: #{my_av_subnet_forward.1} parent=1 // pred_region
      _
    $region41: #{my_av_subnet_forward.1} parent=1 // pred_fallthru
      _
    // Predicated region
    $region42: #{my_av_subnet_forward.1} parent=1 // pred_check
      _
    $region43: #{my_av_subnet_forward.1} parent=1 // pred_check_branch
      %45 = sbr.rel (0) target = $region45
    $region44: #{my_av_subnet_forward.1} parent=1 // pred_region
      _
    $region45: #{my_av_subnet_forward.1} parent=1 // pred_fallthru
      _
    // Predicated region
    $region46: #{my_av_subnet_forward.1} parent=1 // pred_check
      _
    $region47: #{my_av_subnet_forward.1} parent=1 // pred_check_branch
      %47 = sbr.rel (0) target = $region49
    $region48: #{my_av_subnet_forward.1} parent=1 // pred_region
      _
    $region49: #{my_av_subnet_forward.1} parent=1 // pred_fallthru
      _
    // Predicated region
    $region50: #{my_av_subnet_forward.1} parent=1 // pred_check
      _
    $region51: #{my_av_subnet_forward.1} parent=1 // pred_check_branch
      %49 = sbr.rel (0) target = $region53
    $region52: #{my_av_subnet_forward.1} parent=1 // pred_region
      _
    $region53: #{my_av_subnet_forward.1} parent=1 // pred_fallthru
      _
    // Predicated region
    $region54: #{my_av_subnet_forward.1} parent=1 // pred_check
      _
    $region55: #{my_av_subnet_forward.1} parent=1 // pred_check_branch
      %51 = sbr.rel (0) target = $region57
    $region56: #{my_av_subnet_forward.1} parent=1 // pred_region
      _
    $region57: #{my_av_subnet_forward.1} parent=1 // pred_fallthru
      _
    // Predicated region
    $region58: #{my_av_subnet_forward.1} parent=1 // pred_check
      _
    $region59: #{my_av_subnet_forward.1} parent=1 // pred_check_branch
      %53 = sbr.rel (0) target = $region61
    $region60: #{my_av_subnet_forward.1} parent=1 // pred_region
      _
    $region61: #{my_av_subnet_forward.1} parent=1 // pred_fallthru
      _
    // Predicated region
    $region62: #{my_av_subnet_forward.1} parent=1 // pred_check
      _
    $region63: #{my_av_subnet_forward.1} parent=1 // pred_check_branch
      %55 = sbr.rel (0) target = $region65
    $region64: #{my_av_subnet_forward.1} parent=1 // pred_region
      _
    $region65: #{my_av_subnet_forward.1} parent=1 // pred_fallthru
      _
    // Predicated region
    $region66: #{my_av_subnet_forward.1} parent=1 // pred_check
      _
    $region67: #{my_av_subnet_forward.1} parent=1 // pred_check_branch
      %57 = sbr.rel (0) target = $region69
    $region68: #{my_av_subnet_forward.1} parent=1 // pred_region
      _
    $region69: #{my_av_subnet_forward.1} parent=1 // pred_fallthru
      _
    // Predicated region
    $region70: #{my_av_subnet_forward.1} parent=1 // pred_check
      _
    $region71: #{my_av_subnet_forward.1} parent=1 // pred_check_branch
      %59 = sbr.rel (0) target = $region73
    $region72: #{my_av_subnet_forward.1} parent=1 // pred_region
      _
    $region73: #{my_av_subnet_forward.1} parent=1 // pred_fallthru
      _
    %v60 = vld [vmem:[%s0] sm:$0xff]
    %v61 = vld [vmem:[%s0 + $0x8] sm:$0xff]
    %v62 = vld [vmem:[%s3] sm:$0xff]
    %v63 = vld [vmem:[%s3 + $0x8] sm:$0xff]
    %v64 = vld [vmem:[%s3 + $0x10] sm:$0xf]
    %vm65 = vcmask 162816
    %v67 = vsel %vm65, %v60, 0
    %v70 = vsel %vm65, %v61, 0
    %vm72 = vcmask 1043456
    %v74 = vsel %vm72, %v64, 0
    %76 = vmatprep.subr.mxu0 0.0
    %77 = vmatpush1.msra.mxu0 0.0
    %78 = vmatprep.subr.mxu0 0.0
    %79 = vmatpush1.msra.mxu0 0.0
    %80 = vmatprep.subr.mxu0 0.0
    %81 = vmatpush1.msra.mxu0 0.0
    %82 = vmatprep.subr.mxu0 0.0
    %83 = vmatpush1.msra.mxu0 0.0
    %84 = vmatprep.subr.mxu0 0.0
    %85 = vmatpush1.msra.mxu0 0.0
    %86 = vmatprep.subr.mxu0 0.0
    %87 = vmatpush1.msra.mxu0 0.0
    %88 = vmatprep.subr.mxu0 0.0
    %89 = vmatpush1.msra.mxu0 0.0
    %90 = vmatprep.subr.mxu0 0.0
    %91 = vmatpush1.msra.mxu0 0.0
    %92 = vmatprep.subr.mxu0 0.0
    %93 = vmatpush1.msra.mxu0 0.0
    %94 = vmatprep.subr.mxu0 0.0
    %95 = vmatpush1.msra.mxu0 0.0
    %96 = vmatprep.subr.mxu0 0.0
    %97 = vmatpush1.msra.mxu0 0.0
    %98 = vmatprep.subr.mxu0 0.0
    %99 = vmatpush1.msra.mxu0 0.0
    %100 = vmatprep.subr.mxu0 0.0
    %101 = vmatpush1.msra.mxu0 0.0
    %102 = vmatprep.subr.mxu0 0.0
    %103 = vmatpush1.msra.mxu0 %v74
    %104 = vmatprep.subr.mxu0 0.0
    %105 = vmatpush1.msra.mxu0 %v63
    %106 = vmatprep.subr.mxu0 0.0
    %107 = vmatpush1.msra.mxu0 %v62
    %108 = vmatprep.subr.mxu0 0.0
    %109 = vmatpush2.msra.mxu0 0.0
    %110 = vmatprep.subr.mxu0 0.0
    %111 = vmatpush2.msra.mxu0 0.0
    %112 = vmatprep.subr.mxu0 0.0
    %113 = vmatpush2.msra.mxu0 0.0
    %114 = vmatprep.subr.mxu0 0.0
    %115 = vmatpush2.msra.mxu0 0.0
    %116 = vmatprep.subr.mxu0 0.0
    %117 = vmatpush2.msra.mxu0 0.0
    %118 = vmatprep.subr.mxu0 0.0
    %119 = vmatpush2.msra.mxu0 0.0
    %120 = vmatprep.subr.mxu0 0.0
    %121 = vmatpush2.msra.mxu0 0.0
    %122 = vmatprep.subr.mxu0 0.0
    %123 = vmatpush2.msra.mxu0 0.0
    %124 = vmatprep.subr.mxu0 0.0
    %125 = vmatpush2.msra.mxu0 0.0
    %126 = vmatprep.subr.mxu0 0.0
    %127 = vmatpush2.msra.mxu0 0.0
    %128 = vmatprep.subr.mxu0 0.0
    %129 = vmatpush2.msra.mxu0 0.0
    %130 = vmatprep.subr.mxu0 0.0
    %131 = vmatpush2.msra.mxu0 0.0
    %132 = vmatprep.subr.mxu0 0.0
    %133 = vmatpush2.msra.mxu0 0.0
    %134 = vmatprep.subr.mxu0 0.0
    %135 = vmatpush2.msra.mxu0 0.0
    %136 = vmatprep.subr.mxu0 0.0
    %137 = vmatpush2.msra.mxu0 0.0
    %138 = vmatprep.subr.mxu0 0.0
    %139 = vmatpush2.msra.mxu0 0.0
    %140 = vmatprep.mubr.f32.mxu0 0.0
    %141 = vmatmul.mubr.f32.gmra.mxu0 %v67
    %v142 = vpop.f32.mrf.mxu0
    %v143 = vadd.f32 0.0, %v142
    %v144 = vpop.f32.mrf.mxu0
    %145 = vmatprep.mubr.f32.mxu0 0.0
    %146 = vmatmul.mubr.f32.gmra.mxu0 %v70
    %v147 = vpop.f32.mrf.mxu0
    %v148 = vadd.f32 0.0, %v147
    %v149 = vpop.f32.mrf.mxu0
    %150 = vdwg.mxu0
    %v151 = vmul.f32 %v143, 5.656854
    %v152 = vmul.f32 %v148, 5.656854
    %v153 = vld [vmem:[%s1] sm:$0xff]
    %v154 = vld [vmem:[%s1 + $0x8] sm:$0xff]
    %v155 = vadd.f32 %v151, %v153
    %v156 = vadd.f32 %v152, %v154
    %vm157 = vcmask 261120
    %158 = vst.msk [vmem:[#allocation2] sm:$0xff] %vm157, %v155
    %159 = vst.msk [vmem:[#allocation2 + $0x8] sm:$0xff] %vm157, %v156
    %v160 = vld [vmem:[%s2] sm:$0xff]
    %v161 = vld [vmem:[%s2 + $0x8] sm:$0xff]
    loop: start=0, step=1, limit=6
    $region74: #{my_av_subnet_forward.1} parent=1 // loop_pre_header
      _
    $region75: #{my_av_subnet_forward.1} parent=1 // loop_header
      %s163 = sphi 0, %s167
      %p164 = scmp.ge.s32.totalorder %s163, 6
    $region76: #{my_av_subnet_forward.1} parent=1 // loop_header_branch
      %166 = sbr.rel (%p164) target = $region80
    $region77: #{my_av_subnet_forward.1} parent=1 // loop_body
      %v168 = vld [vmem:[#allocation2] sm:$0xff]
      %v169 = vld [vmem:[#allocation2 + $0x8] sm:$0xff]
      %s170 = scalar_lea.vmem %s4, %s163
      %v171 = vld [vmem:[%s170] sm:$0x1]
      %s172 = scalar_lea.vmem %s5, %s163
      %v173 = vld [vmem:[%s172] sm:$0x1]
      %v174 = vsel %vm157, %v168, 0.0
      %175 = vadd.xlane.f32.xlu0 %v174
      %v176 = vpop.xlane.xlu0 %175
      %v177 = vsel %vm157, %v169, 0.0
      %178 = vadd.xlane.f32.xlu0 %v177
      %v179 = vpop.xlane.xlu0 %178
      %v180 = vrcp.pop 32.0
      %v181 = vmul.f32 %v176, %v180
      %v182 = vmul.f32 %v179, %v180
      %v183 = vsub.f32 %v168, %v181
      %v184 = vsub.f32 %v169, %v182
      %v185 = vmul.f32 %v183, %v183
      %v186 = vmul.f32 %v184, %v184
      %v187 = vsel %vm157, %v185, 0.0
      %188 = vadd.xlane.f32.xlu0 %v187
      %v189 = vpop.xlane.xlu0 %188
      %v190 = vsel %vm157, %v186, 0.0
      %191 = vadd.xlane.f32.xlu0 %v190
      %v192 = vpop.xlane.xlu0 %191
      %v193 = vmul.f32 %v189, %v180
      %v194 = vmul.f32 %v192, %v180
      %v195 = vadd.f32 %v193, 1e-05
      %v196 = vadd.f32 %v194, 1e-05
      %v197 = vrsqrt.pop %v195
      %v198 = vrsqrt.pop %v196
      %v199 = vmul.f32 %v183, %v197
      %v200 = vmul.f32 %v184, %v198
      %v202 = vlaneseq
      %v203 = vshrl.u32 %v202, 7
      %v204 = vsub.s32 0, %v203
      %v205 = vrot.slane %v171, %v204
      %v207 = vmul.f32 %v199, %v205
      %v208 = vmul.f32 %v200, %v205
      %v210 = vlaneseq
      %v211 = vshrl.u32 %v210, 7
      %v212 = vsub.s32 0, %v211
      %v213 = vrot.slane %v173, %v212
      %v215 = vadd.f32 %v207, %v213
      %v216 = vadd.f32 %v208, %v213
      %s217 = smul.u32 %s163, 32
      %s218 = scalar_lea.vmem %s6, %s217
      %v219 = vld [vmem:[%s218] sm:$0xff]
      %v220 = vld [vmem:[%s218 + $0x8] sm:$0xff]
      %v221 = vld [vmem:[%s218 + $0x10] sm:$0xff]
      %v222 = vld [vmem:[%s218 + $0x18] sm:$0xff]
      %s223 = scalar_lea.vmem %s7, %s163
      %v224 = vld [vmem:[%s223] sm:$0x1]
      %v226 = vlaneseq
      %v227 = vshrl.u32 %v226, 7
      %v228 = vsub.s32 0, %v227
      %v229 = vrot.slane %v224, %v228
      %v232 = vsel %vm157, %v215, 0
      %v235 = vsel %vm157, %v216, 0
      %237 = vmatprep.subr.mxu0 0.0
      %238 = vmatpush1.msra.mxu0 0.0
      %239 = vmatprep.subr.mxu0 0.0
      %240 = vmatpush1.msra.mxu0 0.0
      %241 = vmatprep.subr.mxu0 0.0
      %242 = vmatpush1.msra.mxu0 0.0
      %243 = vmatprep.subr.mxu0 0.0
      %244 = vmatpush1.msra.mxu0 0.0
      %245 = vmatprep.subr.mxu0 0.0
      %246 = vmatpush1.msra.mxu0 0.0
      %247 = vmatprep.subr.mxu0 0.0
      %248 = vmatpush1.msra.mxu0 0.0
      %249 = vmatprep.subr.mxu0 0.0
      %250 = vmatpush1.msra.mxu0 0.0
      %251 = vmatprep.subr.mxu0 0.0
      %252 = vmatpush1.msra.mxu0 0.0
      %253 = vmatprep.subr.mxu0 0.0
      %254 = vmatpush1.msra.mxu0 0.0
      %255 = vmatprep.subr.mxu0 0.0
      %256 = vmatpush1.msra.mxu0 0.0
      %257 = vmatprep.subr.mxu0 0.0
      %258 = vmatpush1.msra.mxu0 0.0
      %259 = vmatprep.subr.mxu0 0.0
      %260 = vmatpush1.msra.mxu0 0.0
      %261 = vmatprep.subr.mxu0 0.0
      %262 = vmatpush1.msra.mxu0 %v222
      %263 = vmatprep.subr.mxu0 0.0
      %264 = vmatpush1.msra.mxu0 %v221
      %265 = vmatprep.subr.mxu0 0.0
      %266 = vmatpush1.msra.mxu0 %v220
      %267 = vmatprep.subr.mxu0 0.0
      %268 = vmatpush1.msra.mxu0 %v219
      %269 = vmatprep.subr.mxu0 0.0
      %270 = vmatpush2.msra.mxu0 0.0
      %271 = vmatprep.subr.mxu0 0.0
      %272 = vmatpush2.msra.mxu0 0.0
      %273 = vmatprep.subr.mxu0 0.0
      %274 = vmatpush2.msra.mxu0 0.0
      %275 = vmatprep.subr.mxu0 0.0
      %276 = vmatpush2.msra.mxu0 0.0
      %277 = vmatprep.subr.mxu0 0.0
      %278 = vmatpush2.msra.mxu0 0.0
      %279 = vmatprep.subr.mxu0 0.0
      %280 = vmatpush2.msra.mxu0 0.0
      %281 = vmatprep.subr.mxu0 0.0
      %282 = vmatpush2.msra.mxu0 0.0
      %283 = vmatprep.subr.mxu0 0.0
      %284 = vmatpush2.msra.mxu0 0.0
      %285 = vmatprep.subr.mxu0 0.0
      %286 = vmatpush2.msra.mxu0 0.0
      %287 = vmatprep.subr.mxu0 0.0
      %288 = vmatpush2.msra.mxu0 0.0
      %289 = vmatprep.subr.mxu0 0.0
      %290 = vmatpush2.msra.mxu0 0.0
      %291 = vmatprep.subr.mxu0 0.0
      %292 = vmatpush2.msra.mxu0 0.0
      %293 = vmatprep.subr.mxu0 0.0
      %294 = vmatpush2.msra.mxu0 0.0
      %295 = vmatprep.subr.mxu0 0.0
      %296 = vmatpush2.msra.mxu0 0.0
      %297 = vmatprep.subr.mxu0 0.0
      %298 = vmatpush2.msra.mxu0 0.0
      %299 = vmatprep.subr.mxu0 0.0
      %300 = vmatpush2.msra.mxu0 0.0
      %301 = vmatprep.mubr.f32.mxu0 0.0
      %302 = vmatmul.mubr.f32.gmra.mxu0 %v232
      %v303 = vpop.f32.mrf.mxu0
      %v304 = vadd.f32 %v229, %v303
      %v305 = vpop.f32.mrf.mxu0
      %306 = vmatprep.mubr.f32.mxu0 0.0
      %307 = vmatmul.mubr.f32.gmra.mxu0 %v235
      %v308 = vpop.f32.mrf.mxu0
      %v309 = vadd.f32 %v229, %v308
      %v310 = vpop.f32.mrf.mxu0
      %311 = vdwg.mxu0
      %v312 = vmul.f32 %v304, 0.35355338
      %v313 = vmul.f32 %v309, 0.35355338
      %316 = vrot.lane.b32.xlu0 %v304, 96
      %v317 = vpop.permute.xlu0 %316
      %318 = vrot.lane.b32.xlu0 %v309, 96
      %v319 = vpop.permute.xlu0 %318
      %vm320 = vcmask 64512
      %v322 = vsel %vm320, %v312, 0
      %v325 = vsel %vm320, %v313, 0
      %v327 = vsel %vm320, %v317, 0
      %v329 = vsel %vm320, %v319, 0
      %331 = vmatprep.subr.mxu0 0.0
      %332 = vmatpush1.xpose.msra.mxu0 0.0
      %333 = vmatprep.subr.mxu0 0.0
      %334 = vmatpush1.xpose.msra.mxu0 0.0
      %335 = vmatprep.subr.mxu0 0.0
      %336 = vmatpush1.xpose.msra.mxu0 0.0
      %337 = vmatprep.subr.mxu0 0.0
      %338 = vmatpush1.xpose.msra.mxu0 0.0
      %339 = vmatprep.subr.mxu0 0.0
      %340 = vmatpush1.xpose.msra.mxu0 0.0
      %341 = vmatprep.subr.mxu0 0.0
      %342 = vmatpush1.xpose.msra.mxu0 0.0
      %343 = vmatprep.subr.mxu0 0.0
      %344 = vmatpush1.xpose.msra.mxu0 0.0
      %345 = vmatprep.subr.mxu0 0.0
      %346 = vmatpush1.xpose.msra.mxu0 0.0
      %347 = vmatprep.subr.mxu0 0.0
      %348 = vmatpush1.xpose.msra.mxu0 0.0
      %349 = vmatprep.subr.mxu0 0.0
      %350 = vmatpush1.xpose.msra.mxu0 0.0
      %351 = vmatprep.subr.mxu0 0.0
      %352 = vmatpush1.xpose.msra.mxu0 0.0
      %353 = vmatprep.subr.mxu0 0.0
      %354 = vmatpush1.xpose.msra.mxu0 0.0
      %355 = vmatprep.subr.mxu0 0.0
      %356 = vmatpush1.xpose.msra.mxu0 0.0
      %357 = vmatprep.subr.mxu0 0.0
      %358 = vmatpush1.xpose.msra.mxu0 0.0
      %359 = vmatprep.subr.mxu0 0.0
      %360 = vmatpush1.xpose.msra.mxu0 %v329
      %361 = vmatprep.subr.mxu0 0.0
      %362 = vmatpush1.xpose.msra.mxu0 %v327
      %363 = vmatprep.subr.mxu0 0.0
      %364 = vmatpush2.xpose.msra.mxu0 0.0
      %365 = vmatprep.subr.mxu0 0.0
      %366 = vmatpush2.xpose.msra.mxu0 0.0
      %367 = vmatprep.subr.mxu0 0.0
      %368 = vmatpush2.xpose.msra.mxu0 0.0
      %369 = vmatprep.subr.mxu0 0.0
      %370 = vmatpush2.xpose.msra.mxu0 0.0
      %371 = vmatprep.subr.mxu0 0.0
      %372 = vmatpush2.xpose.msra.mxu0 0.0
      %373 = vmatprep.subr.mxu0 0.0
      %374 = vmatpush2.xpose.msra.mxu0 0.0
      %375 = vmatprep.subr.mxu0 0.0
      %376 = vmatpush2.xpose.msra.mxu0 0.0
      %377 = vmatprep.subr.mxu0 0.0
      %378 = vmatpush2.xpose.msra.mxu0 0.0
      %379 = vmatprep.subr.mxu0 0.0
      %380 = vmatpush2.xpose.msra.mxu0 0.0
      %381 = vmatprep.subr.mxu0 0.0
      %382 = vmatpush2.xpose.msra.mxu0 0.0
      %383 = vmatprep.subr.mxu0 0.0
      %384 = vmatpush2.xpose.msra.mxu0 0.0
      %385 = vmatprep.subr.mxu0 0.0
      %386 = vmatpush2.xpose.msra.mxu0 0.0
      %387 = vmatprep.subr.mxu0 0.0
      %388 = vmatpush2.xpose.msra.mxu0 0.0
      %389 = vmatprep.subr.mxu0 0.0
      %390 = vmatpush2.xpose.msra.mxu0 0.0
      %391 = vmatprep.subr.mxu0 0.0
      %392 = vmatpush2.xpose.msra.mxu0 0.0
      %393 = vmatprep.subr.mxu0 0.0
      %394 = vmatpush2.xpose.msra.mxu0 0.0
      %395 = vmatprep.mubr.f32.mxu0 0.0
      %396 = vmatmul.mubr.f32.gmra.mxu0 %v322
      %v397 = vpop.f32.mrf.mxu0
      %v398 = vadd.f32 %v160, %v397
      %v399 = vpop.f32.mrf.mxu0
      %400 = vmatprep.mubr.f32.mxu0 0.0
      %401 = vmatmul.mubr.f32.gmra.mxu0 %v325
      %v402 = vpop.f32.mrf.mxu0
      %v403 = vadd.f32 %v161, %v402
      %v404 = vpop.f32.mrf.mxu0
      %405 = vdwg.mxu0
      %vm406 = vcmask 130048
      %v407 = vsel %vm406, %v398, -inf
      %408 = vmax.xlane.f32.xlu0 %v407
      %v409 = vpop.xlane.xlu0 %408
      %v410 = vsel %vm406, %v403, -inf
      %411 = vmax.xlane.f32.xlu0 %v410
      %v412 = vpop.xlane.xlu0 %411
      %v413 = vsub.f32 %v398, %v409
      %v414 = vsub.f32 %v403, %v412
      %v415 = vmul.f32 %v413, 1.442695
      %v416 = vpow.pop %v415
      %v417 = vmul.f32 %v414, 1.442695
      %v418 = vpow.pop %v417
      %v419 = vsel %vm406, %v416, 0.0
      %420 = vadd.xlane.f32.xlu0 %v419
      %v421 = vpop.xlane.xlu0 %420
      %v422 = vsel %vm406, %v418, 0.0
      %423 = vadd.xlane.f32.xlu0 %v422
      %v424 = vpop.xlane.xlu0 %423
      %v425 = vrcp.pop %v421
      %v426 = vrcp.pop %v424
      %v427 = vmul.f32 %v416, %v425
      %v428 = vmul.f32 %v418, %v426
      %429 = vrot.lane.b32.xlu0 %v304, 64
      %v430 = vpop.permute.xlu0 %429
      %431 = vrot.lane.b32.xlu0 %v309, 64
      %v432 = vpop.permute.xlu0 %431
      %v436 = vsel %vm406, %v427, 0
      %v439 = vsel %vm406, %v428, 0
      %441 = vmatprep.subr.mxu0 0.0
      %442 = vmatpush1.msra.mxu0 0.0
      %443 = vmatprep.subr.mxu0 0.0
      %444 = vmatpush1.msra.mxu0 0.0
      %445 = vmatprep.subr.mxu0 0.0
      %446 = vmatpush1.msra.mxu0 0.0
      %447 = vmatprep.subr.mxu0 0.0
      %448 = vmatpush1.msra.mxu0 0.0
      %449 = vmatprep.subr.mxu0 0.0
      %450 = vmatpush1.msra.mxu0 0.0
      %451 = vmatprep.subr.mxu0 0.0
      %452 = vmatpush1.msra.mxu0 0.0
      %453 = vmatprep.subr.mxu0 0.0
      %454 = vmatpush1.msra.mxu0 0.0
      %455 = vmatprep.subr.mxu0 0.0
      %456 = vmatpush1.msra.mxu0 0.0
      %457 = vmatprep.subr.mxu0 0.0
      %458 = vmatpush1.msra.mxu0 0.0
      %459 = vmatprep.subr.mxu0 0.0
      %460 = vmatpush1.msra.mxu0 0.0
      %461 = vmatprep.subr.mxu0 0.0
      %462 = vmatpush1.msra.mxu0 0.0
      %463 = vmatprep.subr.mxu0 0.0
      %464 = vmatpush1.msra.mxu0 0.0
      %465 = vmatprep.subr.mxu0 0.0
      %466 = vmatpush1.msra.mxu0 0.0
      %467 = vmatprep.subr.mxu0 0.0
      %468 = vmatpush1.msra.mxu0 0.0
      %469 = vmatprep.subr.mxu0 0.0
      %470 = vmatpush1.msra.mxu0 %v432
      %471 = vmatprep.subr.mxu0 0.0
      %472 = vmatpush1.msra.mxu0 %v430
      %473 = vmatprep.subr.mxu0 0.0
      %474 = vmatpush2.msra.mxu0 0.0
      %475 = vmatprep.subr.mxu0 0.0
      %476 = vmatpush2.msra.mxu0 0.0
      %477 = vmatprep.subr.mxu0 0.0
      %478 = vmatpush2.msra.mxu0 0.0
      %479 = vmatprep.subr.mxu0 0.0
      %480 = vmatpush2.msra.mxu0 0.0
      %481 = vmatprep.subr.mxu0 0.0
      %482 = vmatpush2.msra.mxu0 0.0
      %483 = vmatprep.subr.mxu0 0.0
      %484 = vmatpush2.msra.mxu0 0.0
      %485 = vmatprep.subr.mxu0 0.0
      %486 = vmatpush2.msra.mxu0 0.0
      %487 = vmatprep.subr.mxu0 0.0
      %488 = vmatpush2.msra.mxu0 0.0
      %489 = vmatprep.subr.mxu0 0.0
      %490 = vmatpush2.msra.mxu0 0.0
      %491 = vmatprep.subr.mxu0 0.0
      %492 = vmatpush2.msra.mxu0 0.0
      %493 = vmatprep.subr.mxu0 0.0
      %494 = vmatpush2.msra.mxu0 0.0
      %495 = vmatprep.subr.mxu0 0.0
      %496 = vmatpush2.msra.mxu0 0.0
      %497 = vmatprep.subr.mxu0 0.0
      %498 = vmatpush2.msra.mxu0 0.0
      %499 = vmatprep.subr.mxu0 0.0
      %500 = vmatpush2.msra.mxu0 0.0
      %501 = vmatprep.subr.mxu0 0.0
      %502 = vmatpush2.msra.mxu0 0.0
      %503 = vmatprep.subr.mxu0 0.0
      %504 = vmatpush2.msra.mxu0 0.0
      %505 = vmatprep.mubr.f32.mxu0 0.0
      %506 = vmatmul.mubr.f32.gmra.mxu0 %v436
      %v507 = vpop.f32.mrf.mxu0
      %v508 = vadd.f32 0.0, %v507
      %v509 = vpop.f32.mrf.mxu0
      %510 = vmatprep.mubr.f32.mxu0 0.0
      %511 = vmatmul.mubr.f32.gmra.mxu0 %v439
      %v512 = vpop.f32.mrf.mxu0
      %v513 = vadd.f32 0.0, %v512
      %v514 = vpop.f32.mrf.mxu0
      %515 = vdwg.mxu0
      %516 = vrot.lane.b32.xlu0 %v312, 120
      %v517 = vpop.permute.xlu0 %516
      %518 = vrot.lane.b32.xlu0 %v313, 120
      %v519 = vpop.permute.xlu0 %518
      %520 = vrot.lane.b32.xlu0 %v304, 88
      %v521 = vpop.permute.xlu0 %520
      %522 = vrot.lane.b32.xlu0 %v309, 88
      %v523 = vpop.permute.xlu0 %522
      %v524 = vsel %vm320, %v517, 0
      %v526 = vsel %vm320, %v519, 0
      %v528 = vsel %vm320, %v521, 0
      %v530 = vsel %vm320, %v523, 0
      %532 = vmatprep.subr.mxu0 0.0
      %533 = vmatpush1.xpose.msra.mxu0 0.0
      %534 = vmatprep.subr.mxu0 0.0
      %535 = vmatpush1.xpose.msra.mxu0 0.0
      %536 = vmatprep.subr.mxu0 0.0
      %537 = vmatpush1.xpose.msra.mxu0 0.0
      %538 = vmatprep.subr.mxu0 0.0
      %539 = vmatpush1.xpose.msra.mxu0 0.0
      %540 = vmatprep.subr.mxu0 0.0
      %541 = vmatpush1.xpose.msra.mxu0 0.0
      %542 = vmatprep.subr.mxu0 0.0
      %543 = vmatpush1.xpose.msra.mxu0 0.0
      %544 = vmatprep.subr.mxu0 0.0
      %545 = vmatpush1.xpose.msra.mxu0 0.0
      %546 = vmatprep.subr.mxu0 0.0
      %547 = vmatpush1.xpose.msra.mxu0 0.0
      %548 = vmatprep.subr.mxu0 0.0
      %549 = vmatpush1.xpose.msra.mxu0 0.0
      %550 = vmatprep.subr.mxu0 0.0
      %551 = vmatpush1.xpose.msra.mxu0 0.0
      %552 = vmatprep.subr.mxu0 0.0
      %553 = vmatpush1.xpose.msra.mxu0 0.0
      %554 = vmatprep.subr.mxu0 0.0
      %555 = vmatpush1.xpose.msra.mxu0 0.0
      %556 = vmatprep.subr.mxu0 0.0
      %557 = vmatpush1.xpose.msra.mxu0 0.0
      %558 = vmatprep.subr.mxu0 0.0
      %559 = vmatpush1.xpose.msra.mxu0 0.0
      %560 = vmatprep.subr.mxu0 0.0
      %561 = vmatpush1.xpose.msra.mxu0 %v530
      %562 = vmatprep.subr.mxu0 0.0
      %563 = vmatpush1.xpose.msra.mxu0 %v528
      %564 = vmatprep.subr.mxu0 0.0
      %565 = vmatpush2.xpose.msra.mxu0 0.0
      %566 = vmatprep.subr.mxu0 0.0
      %567 = vmatpush2.xpose.msra.mxu0 0.0
      %568 = vmatprep.subr.mxu0 0.0
      %569 = vmatpush2.xpose.msra.mxu0 0.0
      %570 = vmatprep.subr.mxu0 0.0
      %571 = vmatpush2.xpose.msra.mxu0 0.0
      %572 = vmatprep.subr.mxu0 0.0
      %573 = vmatpush2.xpose.msra.mxu0 0.0
      %574 = vmatprep.subr.mxu0 0.0
      %575 = vmatpush2.xpose.msra.mxu0 0.0
      %576 = vmatprep.subr.mxu0 0.0
      %577 = vmatpush2.xpose.msra.mxu0 0.0
      %578 = vmatprep.subr.mxu0 0.0
      %579 = vmatpush2.xpose.msra.mxu0 0.0
      %580 = vmatprep.subr.mxu0 0.0
      %581 = vmatpush2.xpose.msra.mxu0 0.0
      %582 = vmatprep.subr.mxu0 0.0
      %583 = vmatpush2.xpose.msra.mxu0 0.0
      %584 = vmatprep.subr.mxu0 0.0
      %585 = vmatpush2.xpose.msra.mxu0 0.0
      %586 = vmatprep.subr.mxu0 0.0
      %587 = vmatpush2.xpose.msra.mxu0 0.0
      %588 = vmatprep.subr.mxu0 0.0
      %589 = vmatpush2.xpose.msra.mxu0 0.0
      %590 = vmatprep.subr.mxu0 0.0
      %591 = vmatpush2.xpose.msra.mxu0 0.0
      %592 = vmatprep.subr.mxu0 0.0
      %593 = vmatpush2.xpose.msra.mxu0 0.0
      %594 = vmatprep.subr.mxu0 0.0
      %595 = vmatpush2.xpose.msra.mxu0 0.0
      %596 = vmatprep.mubr.f32.mxu0 0.0
      %597 = vmatmul.mubr.f32.gmra.mxu0 %v524
      %v598 = vpop.f32.mrf.mxu0
      %v599 = vadd.f32 %v160, %v598
      %v600 = vpop.f32.mrf.mxu0
      %601 = vmatprep.mubr.f32.mxu0 0.0
      %602 = vmatmul.mubr.f32.gmra.mxu0 %v526
      %v603 = vpop.f32.mrf.mxu0
      %v604 = vadd.f32 %v161, %v603
      %v605 = vpop.f32.mrf.mxu0
      %606 = vdwg.mxu0
      %v607 = vsel %vm406, %v599, -inf
      %608 = vmax.xlane.f32.xlu0 %v607
      %v609 = vpop.xlane.xlu0 %608
      %v610 = vsel %vm406, %v604, -inf
      %611 = vmax.xlane.f32.xlu0 %v610
      %v612 = vpop.xlane.xlu0 %611
      %v613 = vsub.f32 %v599, %v609
      %v614 = vsub.f32 %v604, %v612
      %v615 = vmul.f32 %v613, 1.442695
      %v616 = vpow.pop %v615
      %v617 = vmul.f32 %v614, 1.442695
      %v618 = vpow.pop %v617
      %v619 = vsel %vm406, %v616, 0.0
      %620 = vadd.xlane.f32.xlu0 %v619
      %v621 = vpop.xlane.xlu0 %620
      %v622 = vsel %vm406, %v618, 0.0
      %623 = vadd.xlane.f32.xlu0 %v622
      %v624 = vpop.xlane.xlu0 %623
      %v625 = vrcp.pop %v621
      %v626 = vrcp.pop %v624
      %v627 = vmul.f32 %v616, %v625
      %v628 = vmul.f32 %v618, %v626
      %629 = vrot.lane.b32.xlu0 %v304, 56
      %v630 = vpop.permute.xlu0 %629
      %631 = vrot.lane.b32.xlu0 %v309, 56
      %v632 = vpop.permute.xlu0 %631
      %v636 = vsel %vm406, %v627, 0
      %v639 = vsel %vm406, %v628, 0
      %641 = vmatprep.subr.mxu0 0.0
      %642 = vmatpush1.msra.mxu0 0.0
      %643 = vmatprep.subr.mxu0 0.0
      %644 = vmatpush1.msra.mxu0 0.0
      %645 = vmatprep.subr.mxu0 0.0
      %646 = vmatpush1.msra.mxu0 0.0
      %647 = vmatprep.subr.mxu0 0.0
      %648 = vmatpush1.msra.mxu0 0.0
      %649 = vmatprep.subr.mxu0 0.0
      %650 = vmatpush1.msra.mxu0 0.0
      %651 = vmatprep.subr.mxu0 0.0
      %652 = vmatpush1.msra.mxu0 0.0
      %653 = vmatprep.subr.mxu0 0.0
      %654 = vmatpush1.msra.mxu0 0.0
      %655 = vmatprep.subr.mxu0 0.0
      %656 = vmatpush1.msra.mxu0 0.0
      %657 = vmatprep.subr.mxu0 0.0
      %658 = vmatpush1.msra.mxu0 0.0
      %659 = vmatprep.subr.mxu0 0.0
      %660 = vmatpush1.msra.mxu0 0.0
      %661 = vmatprep.subr.mxu0 0.0
      %662 = vmatpush1.msra.mxu0 0.0
      %663 = vmatprep.subr.mxu0 0.0
      %664 = vmatpush1.msra.mxu0 0.0
      %665 = vmatprep.subr.mxu0 0.0
      %666 = vmatpush1.msra.mxu0 0.0
      %667 = vmatprep.subr.mxu0 0.0
      %668 = vmatpush1.msra.mxu0 0.0
      %669 = vmatprep.subr.mxu0 0.0
      %670 = vmatpush1.msra.mxu0 %v632
      %671 = vmatprep.subr.mxu0 0.0
      %672 = vmatpush1.msra.mxu0 %v630
      %673 = vmatprep.subr.mxu0 0.0
      %674 = vmatpush2.msra.mxu0 0.0
      %675 = vmatprep.subr.mxu0 0.0
      %676 = vmatpush2.msra.mxu0 0.0
      %677 = vmatprep.subr.mxu0 0.0
      %678 = vmatpush2.msra.mxu0 0.0
      %679 = vmatprep.subr.mxu0 0.0
      %680 = vmatpush2.msra.mxu0 0.0
      %681 = vmatprep.subr.mxu0 0.0
      %682 = vmatpush2.msra.mxu0 0.0
      %683 = vmatprep.subr.mxu0 0.0
      %684 = vmatpush2.msra.mxu0 0.0
      %685 = vmatprep.subr.mxu0 0.0
      %686 = vmatpush2.msra.mxu0 0.0
      %687 = vmatprep.subr.mxu0 0.0
      %688 = vmatpush2.msra.mxu0 0.0
      %689 = vmatprep.subr.mxu0 0.0
      %690 = vmatpush2.msra.mxu0 0.0
      %691 = vmatprep.subr.mxu0 0.0
      %692 = vmatpush2.msra.mxu0 0.0
      %693 = vmatprep.subr.mxu0 0.0
      %694 = vmatpush2.msra.mxu0 0.0
      %695 = vmatprep.subr.mxu0 0.0
      %696 = vmatpush2.msra.mxu0 0.0
      %697 = vmatprep.subr.mxu0 0.0
      %698 = vmatpush2.msra.mxu0 0.0
      %699 = vmatprep.subr.mxu0 0.0
      %700 = vmatpush2.msra.mxu0 0.0
      %701 = vmatprep.subr.mxu0 0.0
      %702 = vmatpush2.msra.mxu0 0.0
      %703 = vmatprep.subr.mxu0 0.0
      %704 = vmatpush2.msra.mxu0 0.0
      %705 = vmatprep.mubr.f32.mxu0 0.0
      %706 = vmatmul.mubr.f32.gmra.mxu0 %v636
      %v707 = vpop.f32.mrf.mxu0
      %v708 = vadd.f32 0.0, %v707
      %v709 = vpop.f32.mrf.mxu0
      %710 = vmatprep.mubr.f32.mxu0 0.0
      %711 = vmatmul.mubr.f32.gmra.mxu0 %v639
      %v712 = vpop.f32.mrf.mxu0
      %v713 = vadd.f32 0.0, %v712
      %v714 = vpop.f32.mrf.mxu0
      %715 = vdwg.mxu0
      %716 = vrot.lane.b32.xlu0 %v312, 112
      %v717 = vpop.permute.xlu0 %716
      %718 = vrot.lane.b32.xlu0 %v313, 112
      %v719 = vpop.permute.xlu0 %718
      %720 = vrot.lane.b32.xlu0 %v304, 80
      %v721 = vpop.permute.xlu0 %720
      %722 = vrot.lane.b32.xlu0 %v309, 80
      %v723 = vpop.permute.xlu0 %722
      %v724 = vsel %vm320, %v717, 0
      %v726 = vsel %vm320, %v719, 0
      %v728 = vsel %vm320, %v721, 0
      %v730 = vsel %vm320, %v723, 0
      %732 = vmatprep.subr.mxu0 0.0
      %733 = vmatpush1.xpose.msra.mxu0 0.0
      %734 = vmatprep.subr.mxu0 0.0
      %735 = vmatpush1.xpose.msra.mxu0 0.0
      %736 = vmatprep.subr.mxu0 0.0
      %737 = vmatpush1.xpose.msra.mxu0 0.0
      %738 = vmatprep.subr.mxu0 0.0
      %739 = vmatpush1.xpose.msra.mxu0 0.0
      %740 = vmatprep.subr.mxu0 0.0
      %741 = vmatpush1.xpose.msra.mxu0 0.0
      %742 = vmatprep.subr.mxu0 0.0
      %743 = vmatpush1.xpose.msra.mxu0 0.0
      %744 = vmatprep.subr.mxu0 0.0
      %745 = vmatpush1.xpose.msra.mxu0 0.0
      %746 = vmatprep.subr.mxu0 0.0
      %747 = vmatpush1.xpose.msra.mxu0 0.0
      %748 = vmatprep.subr.mxu0 0.0
      %749 = vmatpush1.xpose.msra.mxu0 0.0
      %750 = vmatprep.subr.mxu0 0.0
      %751 = vmatpush1.xpose.msra.mxu0 0.0
      %752 = vmatprep.subr.mxu0 0.0
      %753 = vmatpush1.xpose.msra.mxu0 0.0
      %754 = vmatprep.subr.mxu0 0.0
      %755 = vmatpush1.xpose.msra.mxu0 0.0
      %756 = vmatprep.subr.mxu0 0.0
      %757 = vmatpush1.xpose.msra.mxu0 0.0
      %758 = vmatprep.subr.mxu0 0.0
      %759 = vmatpush1.xpose.msra.mxu0 0.0
      %760 = vmatprep.subr.mxu0 0.0
      %761 = vmatpush1.xpose.msra.mxu0 %v730
      %762 = vmatprep.subr.mxu0 0.0
      %763 = vmatpush1.xpose.msra.mxu0 %v728
      %764 = vmatprep.subr.mxu0 0.0
      %765 = vmatpush2.xpose.msra.mxu0 0.0
      %766 = vmatprep.subr.mxu0 0.0
      %767 = vmatpush2.xpose.msra.mxu0 0.0
      %768 = vmatprep.subr.mxu0 0.0
      %769 = vmatpush2.xpose.msra.mxu0 0.0
      %770 = vmatprep.subr.mxu0 0.0
      %771 = vmatpush2.xpose.msra.mxu0 0.0
      %772 = vmatprep.subr.mxu0 0.0
      %773 = vmatpush2.xpose.msra.mxu0 0.0
      %774 = vmatprep.subr.mxu0 0.0
      %775 = vmatpush2.xpose.msra.mxu0 0.0
      %776 = vmatprep.subr.mxu0 0.0
      %777 = vmatpush2.xpose.msra.mxu0 0.0
      %778 = vmatprep.subr.mxu0 0.0
      %779 = vmatpush2.xpose.msra.mxu0 0.0
      %780 = vmatprep.subr.mxu0 0.0
      %781 = vmatpush2.xpose.msra.mxu0 0.0
      %782 = vmatprep.subr.mxu0 0.0
      %783 = vmatpush2.xpose.msra.mxu0 0.0
      %784 = vmatprep.subr.mxu0 0.0
      %785 = vmatpush2.xpose.msra.mxu0 0.0
      %786 = vmatprep.subr.mxu0 0.0
      %787 = vmatpush2.xpose.msra.mxu0 0.0
      %788 = vmatprep.subr.mxu0 0.0
      %789 = vmatpush2.xpose.msra.mxu0 0.0
      %790 = vmatprep.subr.mxu0 0.0
      %791 = vmatpush2.xpose.msra.mxu0 0.0
      %792 = vmatprep.subr.mxu0 0.0
      %793 = vmatpush2.xpose.msra.mxu0 0.0
      %794 = vmatprep.subr.mxu0 0.0
      %795 = vmatpush2.xpose.msra.mxu0 0.0
      %796 = vmatprep.mubr.f32.mxu0 0.0
      %797 = vmatmul.mubr.f32.gmra.mxu0 %v724
      %v798 = vpop.f32.mrf.mxu0
      %v799 = vadd.f32 %v160, %v798
      %v800 = vpop.f32.mrf.mxu0
      %801 = vmatprep.mubr.f32.mxu0 0.0
      %802 = vmatmul.mubr.f32.gmra.mxu0 %v726
      %v803 = vpop.f32.mrf.mxu0
      %v804 = vadd.f32 %v161, %v803
      %v805 = vpop.f32.mrf.mxu0
      %806 = vdwg.mxu0
      %v807 = vsel %vm406, %v799, -inf
      %808 = vmax.xlane.f32.xlu0 %v807
      %v809 = vpop.xlane.xlu0 %808
      %v810 = vsel %vm406, %v804, -inf
      %811 = vmax.xlane.f32.xlu0 %v810
      %v812 = vpop.xlane.xlu0 %811
      %v813 = vsub.f32 %v799, %v809
      %v814 = vsub.f32 %v804, %v812
      %v815 = vmul.f32 %v813, 1.442695
      %v816 = vpow.pop %v815
      %v817 = vmul.f32 %v814, 1.442695
      %v818 = vpow.pop %v817
      %v819 = vsel %vm406, %v816, 0.0
      %820 = vadd.xlane.f32.xlu0 %v819
      %v821 = vpop.xlane.xlu0 %820
      %v822 = vsel %vm406, %v818, 0.0
      %823 = vadd.xlane.f32.xlu0 %v822
      %v824 = vpop.xlane.xlu0 %823
      %v825 = vrcp.pop %v821
      %v826 = vrcp.pop %v824
      %v827 = vmul.f32 %v816, %v825
      %v828 = vmul.f32 %v818, %v826
      %829 = vrot.lane.b32.xlu0 %v304, 48
      %v830 = vpop.permute.xlu0 %829
      %831 = vrot.lane.b32.xlu0 %v309, 48
      %v832 = vpop.permute.xlu0 %831
      %v836 = vsel %vm406, %v827, 0
      %v839 = vsel %vm406, %v828, 0
      %841 = vmatprep.subr.mxu0 0.0
      %842 = vmatpush1.msra.mxu0 0.0
      %843 = vmatprep.subr.mxu0 0.0
      %844 = vmatpush1.msra.mxu0 0.0
      %845 = vmatprep.subr.mxu0 0.0
      %846 = vmatpush1.msra.mxu0 0.0
      %847 = vmatprep.subr.mxu0 0.0
      %848 = vmatpush1.msra.mxu0 0.0
      %849 = vmatprep.subr.mxu0 0.0
      %850 = vmatpush1.msra.mxu0 0.0
      %851 = vmatprep.subr.mxu0 0.0
      %852 = vmatpush1.msra.mxu0 0.0
      %853 = vmatprep.subr.mxu0 0.0
      %854 = vmatpush1.msra.mxu0 0.0
      %855 = vmatprep.subr.mxu0 0.0
      %856 = vmatpush1.msra.mxu0 0.0
      %857 = vmatprep.subr.mxu0 0.0
      %858 = vmatpush1.msra.mxu0 0.0
      %859 = vmatprep.subr.mxu0 0.0
      %860 = vmatpush1.msra.mxu0 0.0
      %861 = vmatprep.subr.mxu0 0.0
      %862 = vmatpush1.msra.mxu0 0.0
      %863 = vmatprep.subr.mxu0 0.0
      %864 = vmatpush1.msra.mxu0 0.0
      %865 = vmatprep.subr.mxu0 0.0
      %866 = vmatpush1.msra.mxu0 0.0
      %867 = vmatprep.subr.mxu0 0.0
      %868 = vmatpush1.msra.mxu0 0.0
      %869 = vmatprep.subr.mxu0 0.0
      %870 = vmatpush1.msra.mxu0 %v832
      %871 = vmatprep.subr.mxu0 0.0
      %872 = vmatpush1.msra.mxu0 %v830
      %873 = vmatprep.subr.mxu0 0.0
      %874 = vmatpush2.msra.mxu0 0.0
      %875 = vmatprep.subr.mxu0 0.0
      %876 = vmatpush2.msra.mxu0 0.0
      %877 = vmatprep.subr.mxu0 0.0
      %878 = vmatpush2.msra.mxu0 0.0
      %879 = vmatprep.subr.mxu0 0.0
      %880 = vmatpush2.msra.mxu0 0.0
      %881 = vmatprep.subr.mxu0 0.0
      %882 = vmatpush2.msra.mxu0 0.0
      %883 = vmatprep.subr.mxu0 0.0
      %884 = vmatpush2.msra.mxu0 0.0
      %885 = vmatprep.subr.mxu0 0.0
      %886 = vmatpush2.msra.mxu0 0.0
      %887 = vmatprep.subr.mxu0 0.0
      %888 = vmatpush2.msra.mxu0 0.0
      %889 = vmatprep.subr.mxu0 0.0
      %890 = vmatpush2.msra.mxu0 0.0
      %891 = vmatprep.subr.mxu0 0.0
      %892 = vmatpush2.msra.mxu0 0.0
      %893 = vmatprep.subr.mxu0 0.0
      %894 = vmatpush2.msra.mxu0 0.0
      %895 = vmatprep.subr.mxu0 0.0
      %896 = vmatpush2.msra.mxu0 0.0
      %897 = vmatprep.subr.mxu0 0.0
      %898 = vmatpush2.msra.mxu0 0.0
      %899 = vmatprep.subr.mxu0 0.0
      %900 = vmatpush2.msra.mxu0 0.0
      %901 = vmatprep.subr.mxu0 0.0
      %902 = vmatpush2.msra.mxu0 0.0
      %903 = vmatprep.subr.mxu0 0.0
      %904 = vmatpush2.msra.mxu0 0.0
      %905 = vmatprep.mubr.f32.mxu0 0.0
      %906 = vmatmul.mubr.f32.gmra.mxu0 %v836
      %v907 = vpop.f32.mrf.mxu0
      %v908 = vadd.f32 0.0, %v907
      %v909 = vpop.f32.mrf.mxu0
      %910 = vmatprep.mubr.f32.mxu0 0.0
      %911 = vmatmul.mubr.f32.gmra.mxu0 %v839
      %v912 = vpop.f32.mrf.mxu0
      %v913 = vadd.f32 0.0, %v912
      %v914 = vpop.f32.mrf.mxu0
      %915 = vdwg.mxu0
      %916 = vrot.lane.b32.xlu0 %v312, 104
      %v917 = vpop.permute.xlu0 %916
      %918 = vrot.lane.b32.xlu0 %v313, 104
      %v919 = vpop.permute.xlu0 %918
      %920 = vrot.lane.b32.xlu0 %v304, 72
      %v921 = vpop.permute.xlu0 %920
      %922 = vrot.lane.b32.xlu0 %v309, 72
      %v923 = vpop.permute.xlu0 %922
      %v924 = vsel %vm320, %v917, 0
      %v926 = vsel %vm320, %v919, 0
      %v928 = vsel %vm320, %v921, 0
      %v930 = vsel %vm320, %v923, 0
      %932 = vmatprep.subr.mxu0 0.0
      %933 = vmatpush1.xpose.msra.mxu0 0.0
      %934 = vmatprep.subr.mxu0 0.0
      %935 = vmatpush1.xpose.msra.mxu0 0.0
      %936 = vmatprep.subr.mxu0 0.0
      %937 = vmatpush1.xpose.msra.mxu0 0.0
      %938 = vmatprep.subr.mxu0 0.0
      %939 = vmatpush1.xpose.msra.mxu0 0.0
      %940 = vmatprep.subr.mxu0 0.0
      %941 = vmatpush1.xpose.msra.mxu0 0.0
      %942 = vmatprep.subr.mxu0 0.0
      %943 = vmatpush1.xpose.msra.mxu0 0.0
      %944 = vmatprep.subr.mxu0 0.0
      %945 = vmatpush1.xpose.msra.mxu0 0.0
      %946 = vmatprep.subr.mxu0 0.0
      %947 = vmatpush1.xpose.msra.mxu0 0.0
      %948 = vmatprep.subr.mxu0 0.0
      %949 = vmatpush1.xpose.msra.mxu0 0.0
      %950 = vmatprep.subr.mxu0 0.0
      %951 = vmatpush1.xpose.msra.mxu0 0.0
      %952 = vmatprep.subr.mxu0 0.0
      %953 = vmatpush1.xpose.msra.mxu0 0.0
      %954 = vmatprep.subr.mxu0 0.0
      %955 = vmatpush1.xpose.msra.mxu0 0.0
      %956 = vmatprep.subr.mxu0 0.0
      %957 = vmatpush1.xpose.msra.mxu0 0.0
      %958 = vmatprep.subr.mxu0 0.0
      %959 = vmatpush1.xpose.msra.mxu0 0.0
      %960 = vmatprep.subr.mxu0 0.0
      %961 = vmatpush1.xpose.msra.mxu0 %v930
      %962 = vmatprep.subr.mxu0 0.0
      %963 = vmatpush1.xpose.msra.mxu0 %v928
      %964 = vmatprep.subr.mxu0 0.0
      %965 = vmatpush2.xpose.msra.mxu0 0.0
      %966 = vmatprep.subr.mxu0 0.0
      %967 = vmatpush2.xpose.msra.mxu0 0.0
      %968 = vmatprep.subr.mxu0 0.0
      %969 = vmatpush2.xpose.msra.mxu0 0.0
      %970 = vmatprep.subr.mxu0 0.0
      %971 = vmatpush2.xpose.msra.mxu0 0.0
      %972 = vmatprep.subr.mxu0 0.0
      %973 = vmatpush2.xpose.msra.mxu0 0.0
      %974 = vmatprep.subr.mxu0 0.0
      %975 = vmatpush2.xpose.msra.mxu0 0.0
      %976 = vmatprep.subr.mxu0 0.0
      %977 = vmatpush2.xpose.msra.mxu0 0.0
      %978 = vmatprep.subr.mxu0 0.0
      %979 = vmatpush2.xpose.msra.mxu0 0.0
      %980 = vmatprep.subr.mxu0 0.0
      %981 = vmatpush2.xpose.msra.mxu0 0.0
      %982 = vmatprep.subr.mxu0 0.0
      %983 = vmatpush2.xpose.msra.mxu0 0.0
      %984 = vmatprep.subr.mxu0 0.0
      %985 = vmatpush2.xpose.msra.mxu0 0.0
      %986 = vmatprep.subr.mxu0 0.0
      %987 = vmatpush2.xpose.msra.mxu0 0.0
      %988 = vmatprep.subr.mxu0 0.0
      %989 = vmatpush2.xpose.msra.mxu0 0.0
      %990 = vmatprep.subr.mxu0 0.0
      %991 = vmatpush2.xpose.msra.mxu0 0.0
      %992 = vmatprep.subr.mxu0 0.0
      %993 = vmatpush2.xpose.msra.mxu0 0.0
      %994 = vmatprep.subr.mxu0 0.0
      %995 = vmatpush2.xpose.msra.mxu0 0.0
      %996 = vmatprep.mubr.f32.mxu0 0.0
      %997 = vmatmul.mubr.f32.gmra.mxu0 %v924
      %v998 = vpop.f32.mrf.mxu0
      %v999 = vadd.f32 %v160, %v998
      %v1000 = vpop.f32.mrf.mxu0
      %1001 = vmatprep.mubr.f32.mxu0 0.0
      %1002 = vmatmul.mubr.f32.gmra.mxu0 %v926
      %v1003 = vpop.f32.mrf.mxu0
      %v1004 = vadd.f32 %v161, %v1003
      %v1005 = vpop.f32.mrf.mxu0
      %1006 = vdwg.mxu0
      %v1007 = vsel %vm406, %v999, -inf
      %1008 = vmax.xlane.f32.xlu0 %v1007
      %v1009 = vpop.xlane.xlu0 %1008
      %v1010 = vsel %vm406, %v1004, -inf
      %1011 = vmax.xlane.f32.xlu0 %v1010
      %v1012 = vpop.xlane.xlu0 %1011
      %v1013 = vsub.f32 %v999, %v1009
      %v1014 = vsub.f32 %v1004, %v1012
      %v1015 = vmul.f32 %v1013, 1.442695
      %v1016 = vpow.pop %v1015
      %v1017 = vmul.f32 %v1014, 1.442695
      %v1018 = vpow.pop %v1017
      %v1019 = vsel %vm406, %v1016, 0.0
      %1020 = vadd.xlane.f32.xlu0 %v1019
      %v1021 = vpop.xlane.xlu0 %1020
      %v1022 = vsel %vm406, %v1018, 0.0
      %1023 = vadd.xlane.f32.xlu0 %v1022
      %v1024 = vpop.xlane.xlu0 %1023
      %v1025 = vrcp.pop %v1021
      %v1026 = vrcp.pop %v1024
      %v1027 = vmul.f32 %v1016, %v1025
      %v1028 = vmul.f32 %v1018, %v1026
      %1029 = vrot.lane.b32.xlu0 %v304, 40
      %v1030 = vpop.permute.xlu0 %1029
      %1031 = vrot.lane.b32.xlu0 %v309, 40
      %v1032 = vpop.permute.xlu0 %1031
      %v1036 = vsel %vm406, %v1027, 0
      %v1039 = vsel %vm406, %v1028, 0
      %1041 = vmatprep.subr.mxu0 0.0
      %1042 = vmatpush1.msra.mxu0 0.0
      %1043 = vmatprep.subr.mxu0 0.0
      %1044 = vmatpush1.msra.mxu0 0.0
      %1045 = vmatprep.subr.mxu0 0.0
      %1046 = vmatpush1.msra.mxu0 0.0
      %1047 = vmatprep.subr.mxu0 0.0
      %1048 = vmatpush1.msra.mxu0 0.0
      %1049 = vmatprep.subr.mxu0 0.0
      %1050 = vmatpush1.msra.mxu0 0.0
      %1051 = vmatprep.subr.mxu0 0.0
      %1052 = vmatpush1.msra.mxu0 0.0
      %1053 = vmatprep.subr.mxu0 0.0
      %1054 = vmatpush1.msra.mxu0 0.0
      %1055 = vmatprep.subr.mxu0 0.0
      %1056 = vmatpush1.msra.mxu0 0.0
      %1057 = vmatprep.subr.mxu0 0.0
      %1058 = vmatpush1.msra.mxu0 0.0
      %1059 = vmatprep.subr.mxu0 0.0
      %1060 = vmatpush1.msra.mxu0 0.0
      %1061 = vmatprep.subr.mxu0 0.0
      %1062 = vmatpush1.msra.mxu0 0.0
      %1063 = vmatprep.subr.mxu0 0.0
      %1064 = vmatpush1.msra.mxu0 0.0
      %1065 = vmatprep.subr.mxu0 0.0
      %1066 = vmatpush1.msra.mxu0 0.0
      %1067 = vmatprep.subr.mxu0 0.0
      %1068 = vmatpush1.msra.mxu0 0.0
      %1069 = vmatprep.subr.mxu0 0.0
      %1070 = vmatpush1.msra.mxu0 %v1032
      %1071 = vmatprep.subr.mxu0 0.0
      %1072 = vmatpush1.msra.mxu0 %v1030
      %1073 = vmatprep.subr.mxu0 0.0
      %1074 = vmatpush2.msra.mxu0 0.0
      %1075 = vmatprep.subr.mxu0 0.0
      %1076 = vmatpush2.msra.mxu0 0.0
      %1077 = vmatprep.subr.mxu0 0.0
      %1078 = vmatpush2.msra.mxu0 0.0
      %1079 = vmatprep.subr.mxu0 0.0
      %1080 = vmatpush2.msra.mxu0 0.0
      %1081 = vmatprep.subr.mxu0 0.0
      %1082 = vmatpush2.msra.mxu0 0.0
      %1083 = vmatprep.subr.mxu0 0.0
      %1084 = vmatpush2.msra.mxu0 0.0
      %1085 = vmatprep.subr.mxu0 0.0
      %1086 = vmatpush2.msra.mxu0 0.0
      %1087 = vmatprep.subr.mxu0 0.0
      %1088 = vmatpush2.msra.mxu0 0.0
      %1089 = vmatprep.subr.mxu0 0.0
      %1090 = vmatpush2.msra.mxu0 0.0
      %1091 = vmatprep.subr.mxu0 0.0
      %1092 = vmatpush2.msra.mxu0 0.0
      %1093 = vmatprep.subr.mxu0 0.0
      %1094 = vmatpush2.msra.mxu0 0.0
      %1095 = vmatprep.subr.mxu0 0.0
      %1096 = vmatpush2.msra.mxu0 0.0
      %1097 = vmatprep.subr.mxu0 0.0
      %1098 = vmatpush2.msra.mxu0 0.0
      %1099 = vmatprep.subr.mxu0 0.0
      %1100 = vmatpush2.msra.mxu0 0.0
      %1101 = vmatprep.subr.mxu0 0.0
      %1102 = vmatpush2.msra.mxu0 0.0
      %1103 = vmatprep.subr.mxu0 0.0
      %1104 = vmatpush2.msra.mxu0 0.0
      %1105 = vmatprep.mubr.f32.mxu0 0.0
      %1106 = vmatmul.mubr.f32.gmra.mxu0 %v1036
      %v1107 = vpop.f32.mrf.mxu0
      %v1108 = vadd.f32 0.0, %v1107
      %v1109 = vpop.f32.mrf.mxu0
      %1110 = vmatprep.mubr.f32.mxu0 0.0
      %1111 = vmatmul.mubr.f32.gmra.mxu0 %v1039
      %v1112 = vpop.f32.mrf.mxu0
      %v1113 = vadd.f32 0.0, %v1112
      %v1114 = vpop.f32.mrf.mxu0
      %1115 = vdwg.mxu0
      %1118 = vrot.lane.b32.xlu0 %v708, 8
      %v1119 = vpop.permute.xlu0 %1118
      %1120 = vrot.lane.b32.xlu0 %v713, 8
      %v1121 = vpop.permute.xlu0 %1120
      %1126 = vrot.lane.b32.xlu0 %v908, 16
      %v1127 = vpop.permute.xlu0 %1126
      %1128 = vrot.lane.b32.xlu0 %v913, 16
      %v1129 = vpop.permute.xlu0 %1128
      %1134 = vrot.lane.b32.xlu0 %v1108, 24
      %v1135 = vpop.permute.xlu0 %1134
      %1136 = vrot.lane.b32.xlu0 %v1113, 24
      %v1137 = vpop.permute.xlu0 %1136
      %v1140 = vsel %vm320, %v508, %v1119
      %v1141 = vsel %vm320, %v513, %v1121
      %v1142 = vsel %vm406, %v1140, %v1127
      %v1143 = vsel %vm406, %v1141, %v1129
      %vm1144 = vcmask 195584
      %v1145 = vsel %vm1144, %v1142, %v1135
      %v1146 = vsel %vm1144, %v1143, %v1137
      %s1147 = scalar_lea.vmem %s8, %s217
      %v1148 = vld [vmem:[%s1147] sm:$0xff]
      %v1149 = vld [vmem:[%s1147 + $0x8] sm:$0xff]
      %v1150 = vld [vmem:[%s1147 + $0x10] sm:$0xff]
      %v1151 = vld [vmem:[%s1147 + $0x18] sm:$0xff]
      %v1153 = vsel %vm157, %v1145, 0
      %v1156 = vsel %vm157, %v1146, 0
      %1158 = vmatprep.subr.mxu0 0.0
      %1159 = vmatpush1.msra.mxu0 0.0
      %1160 = vmatprep.subr.mxu0 0.0
      %1161 = vmatpush1.msra.mxu0 0.0
      %1162 = vmatprep.subr.mxu0 0.0
      %1163 = vmatpush1.msra.mxu0 0.0
      %1164 = vmatprep.subr.mxu0 0.0
      %1165 = vmatpush1.msra.mxu0 0.0
      %1166 = vmatprep.subr.mxu0 0.0
      %1167 = vmatpush1.msra.mxu0 0.0
      %1168 = vmatprep.subr.mxu0 0.0
      %1169 = vmatpush1.msra.mxu0 0.0
      %1170 = vmatprep.subr.mxu0 0.0
      %1171 = vmatpush1.msra.mxu0 0.0
      %1172 = vmatprep.subr.mxu0 0.0
      %1173 = vmatpush1.msra.mxu0 0.0
      %1174 = vmatprep.subr.mxu0 0.0
      %1175 = vmatpush1.msra.mxu0 0.0
      %1176 = vmatprep.subr.mxu0 0.0
      %1177 = vmatpush1.msra.mxu0 0.0
      %1178 = vmatprep.subr.mxu0 0.0
      %1179 = vmatpush1.msra.mxu0 0.0
      %1180 = vmatprep.subr.mxu0 0.0
      %1181 = vmatpush1.msra.mxu0 0.0
      %1182 = vmatprep.subr.mxu0 0.0
      %1183 = vmatpush1.msra.mxu0 %v1151
      %1184 = vmatprep.subr.mxu0 0.0
      %1185 = vmatpush1.msra.mxu0 %v1150
      %1186 = vmatprep.subr.mxu0 0.0
      %1187 = vmatpush1.msra.mxu0 %v1149
      %1188 = vmatprep.subr.mxu0 0.0
      %1189 = vmatpush1.msra.mxu0 %v1148
      %1190 = vmatprep.subr.mxu0 0.0
      %1191 = vmatpush2.msra.mxu0 0.0
      %1192 = vmatprep.subr.mxu0 0.0
      %1193 = vmatpush2.msra.mxu0 0.0
      %1194 = vmatprep.subr.mxu0 0.0
      %1195 = vmatpush2.msra.mxu0 0.0
      %1196 = vmatprep.subr.mxu0 0.0
      %1197 = vmatpush2.msra.mxu0 0.0
      %1198 = vmatprep.subr.mxu0 0.0
      %1199 = vmatpush2.msra.mxu0 0.0
      %1200 = vmatprep.subr.mxu0 0.0
      %1201 = vmatpush2.msra.mxu0 0.0
      %1202 = vmatprep.subr.mxu0 0.0
      %1203 = vmatpush2.msra.mxu0 0.0
      %1204 = vmatprep.subr.mxu0 0.0
      %1205 = vmatpush2.msra.mxu0 0.0
      %1206 = vmatprep.subr.mxu0 0.0
      %1207 = vmatpush2.msra.mxu0 0.0
      %1208 = vmatprep.subr.mxu0 0.0
      %1209 = vmatpush2.msra.mxu0 0.0
      %1210 = vmatprep.subr.mxu0 0.0
      %1211 = vmatpush2.msra.mxu0 0.0
      %1212 = vmatprep.subr.mxu0 0.0
      %1213 = vmatpush2.msra.mxu0 0.0
      %1214 = vmatprep.subr.mxu0 0.0
      %1215 = vmatpush2.msra.mxu0 0.0
      %1216 = vmatprep.subr.mxu0 0.0
      %1217 = vmatpush2.msra.mxu0 0.0
      %1218 = vmatprep.subr.mxu0 0.0
      %1219 = vmatpush2.msra.mxu0 0.0
      %1220 = vmatprep.subr.mxu0 0.0
      %1221 = vmatpush2.msra.mxu0 0.0
      %1222 = vmatprep.mubr.f32.mxu0 0.0
      %1223 = vmatmul.mubr.f32.gmra.mxu0 %v1153
      %v1224 = vpop.f32.mrf.mxu0
      %v1225 = vadd.f32 0.0, %v1224
      %v1226 = vpop.f32.mrf.mxu0
      %1227 = vmatprep.mubr.f32.mxu0 0.0
      %1228 = vmatmul.mubr.f32.gmra.mxu0 %v1156
      %v1229 = vpop.f32.mrf.mxu0
      %v1230 = vadd.f32 0.0, %v1229
      %v1231 = vpop.f32.mrf.mxu0
      %1232 = vdwg.mxu0
      %v1233 = vadd.f32 %v168, %v1225
      %v1234 = vadd.f32 %v169, %v1230
      %s1235 = scalar_lea.vmem %s9, %s163
      %v1236 = vld [vmem:[%s1235] sm:$0x1]
      %v1238 = vlaneseq
      %v1239 = vshrl.u32 %v1238, 7
      %v1240 = vsub.s32 0, %v1239
      %v1241 = vrot.slane %v1236, %v1240
      %v1243 = vadd.f32 %v1233, %v1241
      %v1244 = vadd.f32 %v1234, %v1241
      %s1245 = scalar_lea.vmem %s10, %s163
      %v1246 = vld [vmem:[%s1245] sm:$0x1]
      %s1247 = scalar_lea.vmem %s11, %s163
      %v1248 = vld [vmem:[%s1247] sm:$0x1]
      %v1249 = vsel %vm157, %v1243, 0.0
      %1250 = vadd.xlane.f32.xlu0 %v1249
      %v1251 = vpop.xlane.xlu0 %1250
      %v1252 = vsel %vm157, %v1244, 0.0
      %1253 = vadd.xlane.f32.xlu0 %v1252
      %v1254 = vpop.xlane.xlu0 %1253
      %v1255 = vmul.f32 %v1251, %v180
      %v1256 = vmul.f32 %v1254, %v180
      %v1257 = vsub.f32 %v1243, %v1255
      %v1258 = vsub.f32 %v1244, %v1256
      %v1259 = vmul.f32 %v1257, %v1257
      %v1260 = vmul.f32 %v1258, %v1258
      %v1261 = vsel %vm157, %v1259, 0.0
      %1262 = vadd.xlane.f32.xlu0 %v1261
      %v1263 = vpop.xlane.xlu0 %1262
      %v1264 = vsel %vm157, %v1260, 0.0
      %1265 = vadd.xlane.f32.xlu0 %v1264
      %v1266 = vpop.xlane.xlu0 %1265
      %v1267 = vmul.f32 %v1263, %v180
      %v1268 = vmul.f32 %v1266, %v180
      %v1269 = vadd.f32 %v1267, 1e-05
      %v1270 = vadd.f32 %v1268, 1e-05
      %v1271 = vrsqrt.pop %v1269
      %v1272 = vrsqrt.pop %v1270
      %v1273 = vmul.f32 %v1257, %v1271
      %v1274 = vmul.f32 %v1258, %v1272
      %v1276 = vlaneseq
      %v1277 = vshrl.u32 %v1276, 7
      %v1278 = vsub.s32 0, %v1277
      %v1279 = vrot.slane %v1246, %v1278
      %v1281 = vmul.f32 %v1273, %v1279
      %v1282 = vmul.f32 %v1274, %v1279
      %v1284 = vlaneseq
      %v1285 = vshrl.u32 %v1284, 7
      %v1286 = vsub.s32 0, %v1285
      %v1287 = vrot.slane %v1248, %v1286
      %v1289 = vadd.f32 %v1281, %v1287
      %v1290 = vadd.f32 %v1282, %v1287
      %s1291 = scalar_lea.vmem %s12, %s217
      %v1292 = vld [vmem:[%s1291] sm:$0xff]
      %v1293 = vld [vmem:[%s1291 + $0x8] sm:$0xff]
      %v1294 = vld [vmem:[%s1291 + $0x10] sm:$0xff]
      %v1295 = vld [vmem:[%s1291 + $0x18] sm:$0xff]
      %s1296 = scalar_lea.vmem %s13, %s163
      %v1297 = vld [vmem:[%s1296] sm:$0x1]
      %v1299 = vlaneseq
      %v1300 = vshrl.u32 %v1299, 7
      %v1301 = vsub.s32 0, %v1300
      %v1302 = vrot.slane %v1297, %v1301
      %v1305 = vsel %vm157, %v1289, 0
      %v1308 = vsel %vm157, %v1290, 0
      %1310 = vmatprep.subr.mxu0 0.0
      %1311 = vmatpush1.msra.mxu0 0.0
      %1312 = vmatprep.subr.mxu0 0.0
      %1313 = vmatpush1.msra.mxu0 0.0
      %1314 = vmatprep.subr.mxu0 0.0
      %1315 = vmatpush1.msra.mxu0 0.0
      %1316 = vmatprep.subr.mxu0 0.0
      %1317 = vmatpush1.msra.mxu0 0.0
      %1318 = vmatprep.subr.mxu0 0.0
      %1319 = vmatpush1.msra.mxu0 0.0
      %1320 = vmatprep.subr.mxu0 0.0
      %1321 = vmatpush1.msra.mxu0 0.0
      %1322 = vmatprep.subr.mxu0 0.0
      %1323 = vmatpush1.msra.mxu0 0.0
      %1324 = vmatprep.subr.mxu0 0.0
      %1325 = vmatpush1.msra.mxu0 0.0
      %1326 = vmatprep.subr.mxu0 0.0
      %1327 = vmatpush1.msra.mxu0 0.0
      %1328 = vmatprep.subr.mxu0 0.0
      %1329 = vmatpush1.msra.mxu0 0.0
      %1330 = vmatprep.subr.mxu0 0.0
      %1331 = vmatpush1.msra.mxu0 0.0
      %1332 = vmatprep.subr.mxu0 0.0
      %1333 = vmatpush1.msra.mxu0 0.0
      %1334 = vmatprep.subr.mxu0 0.0
      %1335 = vmatpush1.msra.mxu0 %v1295
      %1336 = vmatprep.subr.mxu0 0.0
      %1337 = vmatpush1.msra.mxu0 %v1294
      %1338 = vmatprep.subr.mxu0 0.0
      %1339 = vmatpush1.msra.mxu0 %v1293
      %1340 = vmatprep.subr.mxu0 0.0
      %1341 = vmatpush1.msra.mxu0 %v1292
      %1342 = vmatprep.subr.mxu0 0.0
      %1343 = vmatpush2.msra.mxu0 0.0
      %1344 = vmatprep.subr.mxu0 0.0
      %1345 = vmatpush2.msra.mxu0 0.0
      %1346 = vmatprep.subr.mxu0 0.0
      %1347 = vmatpush2.msra.mxu0 0.0
      %1348 = vmatprep.subr.mxu0 0.0
      %1349 = vmatpush2.msra.mxu0 0.0
      %1350 = vmatprep.subr.mxu0 0.0
      %1351 = vmatpush2.msra.mxu0 0.0
      %1352 = vmatprep.subr.mxu0 0.0
      %1353 = vmatpush2.msra.mxu0 0.0
      %1354 = vmatprep.subr.mxu0 0.0
      %1355 = vmatpush2.msra.mxu0 0.0
      %1356 = vmatprep.subr.mxu0 0.0
      %1357 = vmatpush2.msra.mxu0 0.0
      %1358 = vmatprep.subr.mxu0 0.0
      %1359 = vmatpush2.msra.mxu0 0.0
      %1360 = vmatprep.subr.mxu0 0.0
      %1361 = vmatpush2.msra.mxu0 0.0
      %1362 = vmatprep.subr.mxu0 0.0
      %1363 = vmatpush2.msra.mxu0 0.0
      %1364 = vmatprep.subr.mxu0 0.0
      %1365 = vmatpush2.msra.mxu0 0.0
      %1366 = vmatprep.subr.mxu0 0.0
      %1367 = vmatpush2.msra.mxu0 0.0
      %1368 = vmatprep.subr.mxu0 0.0
      %1369 = vmatpush2.msra.mxu0 0.0
      %1370 = vmatprep.subr.mxu0 0.0
      %1371 = vmatpush2.msra.mxu0 0.0
      %1372 = vmatprep.subr.mxu0 0.0
      %1373 = vmatpush2.msra.mxu0 0.0
      %1374 = vmatprep.mubr.f32.mxu0 0.0
      %1375 = vmatmul.mubr.f32.gmra.mxu0 %v1305
      %v1376 = vpop.f32.mrf.mxu0
      %v1377 = vadd.f32 %v1302, %v1376
      %v1378 = vpop.f32.mrf.mxu0
      %1379 = vmatprep.mubr.f32.mxu0 0.0
      %1380 = vmatmul.mubr.f32.gmra.mxu0 %v1308
      %v1381 = vpop.f32.mrf.mxu0
      %v1382 = vadd.f32 %v1302, %v1381
      %v1383 = vpop.f32.mrf.mxu0
      %1384 = vdwg.mxu0
      %v1385 = vmax.f32 %v1377, 0.0
      %v1386 = vmax.f32 %v1382, 0.0
      %s1387 = smul.u32 %s163, 128
      %s1388 = scalar_lea.vmem %s14, %s1387
      %v1389 = vld [vmem:[%s1388] sm:$0xff]
      %v1390 = vld [vmem:[%s1388 + $0x8] sm:$0xff]
      %v1391 = vld [vmem:[%s1388 + $0x10] sm:$0xff]
      %v1392 = vld [vmem:[%s1388 + $0x18] sm:$0xff]
      %v1393 = vld [vmem:[%s1388 + $0x20] sm:$0xff]
      %v1394 = vld [vmem:[%s1388 + $0x28] sm:$0xff]
      %v1395 = vld [vmem:[%s1388 + $0x30] sm:$0xff]
      %v1396 = vld [vmem:[%s1388 + $0x38] sm:$0xff]
      %v1397 = vld [vmem:[%s1388 + $0x40] sm:$0xff]
      %v1398 = vld [vmem:[%s1388 + $0x48] sm:$0xff]
      %v1399 = vld [vmem:[%s1388 + $0x50] sm:$0xff]
      %v1400 = vld [vmem:[%s1388 + $0x58] sm:$0xff]
      %v1401 = vld [vmem:[%s1388 + $0x60] sm:$0xff]
      %v1402 = vld [vmem:[%s1388 + $0x68] sm:$0xff]
      %v1403 = vld [vmem:[%s1388 + $0x70] sm:$0xff]
      %v1404 = vld [vmem:[%s1388 + $0x78] sm:$0xff]
      %1405 = vmatprep.subr.mxu0 0.0
      %1406 = vmatpush1.msra.mxu0 %v1404
      %1407 = vmatprep.subr.mxu0 0.0
      %1408 = vmatpush1.msra.mxu0 %v1403
      %1409 = vmatprep.subr.mxu0 0.0
      %1410 = vmatpush1.msra.mxu0 %v1402
      %1411 = vmatprep.subr.mxu0 0.0
      %1412 = vmatpush1.msra.mxu0 %v1401
      %1413 = vmatprep.subr.mxu0 0.0
      %1414 = vmatpush1.msra.mxu0 %v1400
      %1415 = vmatprep.subr.mxu0 0.0
      %1416 = vmatpush1.msra.mxu0 %v1399
      %1417 = vmatprep.subr.mxu0 0.0
      %1418 = vmatpush1.msra.mxu0 %v1398
      %1419 = vmatprep.subr.mxu0 0.0
      %1420 = vmatpush1.msra.mxu0 %v1397
      %1421 = vmatprep.subr.mxu0 0.0
      %1422 = vmatpush1.msra.mxu0 %v1396
      %1423 = vmatprep.subr.mxu0 0.0
      %1424 = vmatpush1.msra.mxu0 %v1395
      %1425 = vmatprep.subr.mxu0 0.0
      %1426 = vmatpush1.msra.mxu0 %v1394
      %1427 = vmatprep.subr.mxu0 0.0
      %1428 = vmatpush1.msra.mxu0 %v1393
      %1429 = vmatprep.subr.mxu0 0.0
      %1430 = vmatpush1.msra.mxu0 %v1392
      %1431 = vmatprep.subr.mxu0 0.0
      %1432 = vmatpush1.msra.mxu0 %v1391
      %1433 = vmatprep.subr.mxu0 0.0
      %1434 = vmatpush1.msra.mxu0 %v1390
      %1435 = vmatprep.subr.mxu0 0.0
      %1436 = vmatpush1.msra.mxu0 %v1389
      %1437 = vmatprep.subr.mxu0 0.0
      %1438 = vmatpush2.msra.mxu0 0.0
      %1439 = vmatprep.subr.mxu0 0.0
      %1440 = vmatpush2.msra.mxu0 0.0
      %1441 = vmatprep.subr.mxu0 0.0
      %1442 = vmatpush2.msra.mxu0 0.0
      %1443 = vmatprep.subr.mxu0 0.0
      %1444 = vmatpush2.msra.mxu0 0.0
      %1445 = vmatprep.subr.mxu0 0.0
      %1446 = vmatpush2.msra.mxu0 0.0
      %1447 = vmatprep.subr.mxu0 0.0
      %1448 = vmatpush2.msra.mxu0 0.0
      %1449 = vmatprep.subr.mxu0 0.0
      %1450 = vmatpush2.msra.mxu0 0.0
      %1451 = vmatprep.subr.mxu0 0.0
      %1452 = vmatpush2.msra.mxu0 0.0
      %1453 = vmatprep.subr.mxu0 0.0
      %1454 = vmatpush2.msra.mxu0 0.0
      %1455 = vmatprep.subr.mxu0 0.0
      %1456 = vmatpush2.msra.mxu0 0.0
      %1457 = vmatprep.subr.mxu0 0.0
      %1458 = vmatpush2.msra.mxu0 0.0
      %1459 = vmatprep.subr.mxu0 0.0
      %1460 = vmatpush2.msra.mxu0 0.0
      %1461 = vmatprep.subr.mxu0 0.0
      %1462 = vmatpush2.msra.mxu0 0.0
      %1463 = vmatprep.subr.mxu0 0.0
      %1464 = vmatpush2.msra.mxu0 0.0
      %1465 = vmatprep.subr.mxu0 0.0
      %1466 = vmatpush2.msra.mxu0 0.0
      %1467 = vmatprep.subr.mxu0 0.0
      %1468 = vmatpush2.msra.mxu0 0.0
      %1469 = vmatprep.mubr.f32.mxu0 0.0
      %1470 = vmatmul.mubr.f32.gmra.mxu0 %v1385
      %v1471 = vpop.f32.mrf.mxu0
      %v1472 = vadd.f32 0.0, %v1471
      %v1473 = vpop.f32.mrf.mxu0
      %1474 = vmatprep.mubr.f32.mxu0 0.0
      %1475 = vmatmul.mubr.f32.gmra.mxu0 %v1386
      %v1476 = vpop.f32.mrf.mxu0
      %v1477 = vadd.f32 0.0, %v1476
      %v1478 = vpop.f32.mrf.mxu0
      %1479 = vdwg.mxu0
      %v1480 = vadd.f32 %v1243, %v1472
      %v1481 = vadd.f32 %v1244, %v1477
      %s1482 = scalar_lea.vmem %s15, %s163
      %v1483 = vld [vmem:[%s1482] sm:$0x1]
      %v1485 = vlaneseq
      %v1486 = vshrl.u32 %v1485, 7
      %v1487 = vsub.s32 0, %v1486
      %v1488 = vrot.slane %v1483, %v1487
      %v1490 = vadd.f32 %v1480, %v1488
      %v1491 = vadd.f32 %v1481, %v1488
      %1492 = vst.msk [vmem:[#allocation2] sm:$0xff] %vm157, %v1490
      %1493 = vst.msk [vmem:[#allocation2 + $0x8] sm:$0xff] %vm157, %v1491
    $region78: #{my_av_subnet_forward.1} parent=1 // loop_footer
      %s167 = sadd.s32 1, %s163
    $region79: #{my_av_subnet_forward.1} parent=1 // loop_footer_branch
      %162 = sbr.rel target = $region75
    $region80: #{my_av_subnet_forward.1} parent=1 // loop_exit
      _
    %v1494 = vld [vmem:[#allocation2] sm:$0xff]
    %v1495 = vld [vmem:[#allocation2 + $0x8] sm:$0xff]
    %v1496 = vld [vmem:[%s16] sm:$0x1]
    %v1497 = vld [vmem:[%s17] sm:$0x1]
    %v1498 = vsel %vm157, %v1494, 0.0
    %1499 = vadd.xlane.f32.xlu0 %v1498
    %v1500 = vpop.xlane.xlu0 %1499
    %v1501 = vsel %vm157, %v1495, 0.0
    %1502 = vadd.xlane.f32.xlu0 %v1501
    %v1503 = vpop.xlane.xlu0 %1502
    %v1504 = vrcp.pop 32.0
    %v1505 = vmul.f32 %v1500, %v1504
    %v1506 = vmul.f32 %v1503, %v1504
    %v1507 = vsub.f32 %v1494, %v1505
    %v1508 = vsub.f32 %v1495, %v1506
    %v1509 = vmul.f32 %v1507, %v1507
    %v1510 = vmul.f32 %v1508, %v1508
    %v1511 = vsel %vm157, %v1509, 0.0
    %1512 = vadd.xlane.f32.xlu0 %v1511
    %v1513 = vpop.xlane.xlu0 %1512
    %v1514 = vsel %vm157, %v1510, 0.0
    %1515 = vadd.xlane.f32.xlu0 %v1514
    %v1516 = vpop.xlane.xlu0 %1515
    %v1517 = vmul.f32 %v1513, %v1504
    %v1518 = vmul.f32 %v1516, %v1504
    %v1519 = vadd.f32 %v1517, 1e-05
    %v1520 = vadd.f32 %v1518, 1e-05
    %v1521 = vrsqrt.pop %v1519
    %v1522 = vrsqrt.pop %v1520
    %v1523 = vmul.f32 %v1507, %v1521
    %v1524 = vmul.f32 %v1508, %v1522
    %v1526 = vlaneseq
    %v1527 = vshrl.u32 %v1526, 7
    %v1528 = vsub.s32 0, %v1527
    %v1529 = vrot.slane %v1496, %v1528
    %v1531 = vmul.f32 %v1523, %v1529
    %v1532 = vmul.f32 %v1524, %v1529
    %v1534 = vlaneseq
    %v1535 = vshrl.u32 %v1534, 7
    %v1536 = vsub.s32 0, %v1535
    %v1537 = vrot.slane %v1497, %v1536
    %v1539 = vadd.f32 %v1531, %v1537
    %v1540 = vadd.f32 %v1532, %v1537
    %1541 = vst.msk [vmem:[#allocation3] sm:$0xff] %vm157, %v1539
    %1542 = vst.msk [vmem:[#allocation3 + $0x8] sm:$0xff] %vm157, %v1540
    // Predicated region
    $region81: #{my_av_subnet_forward.1} parent=1 // pred_check
      _
    $region82: #{my_av_subnet_forward.1} parent=1 // pred_check_branch
      %1544 = sbr.rel (0) target = $region84
    $region83: #{my_av_subnet_forward.1} parent=1 // pred_region
      %s1546 = ssub.s32 256, 256
      %1547 = vsyncadd [#allocation4], %s1546
      %s1548 = sshll.u32 [#allocation3], 4
      %s1549 = int_to_ptr.vmem [resolvable:$true] %s1548
      %1554 = dma.vmem_to_hbm [thread:$0]  %s1549, 256, %s18, [#allocation4], 128, 128, 8
    $region84: #{my_av_subnet_forward.1} parent=1 // pred_fallthru
      _
    // Predicated region
    $region85: #{my_av_subnet_forward.1} parent=1 // pred_check
      _
    $region86: #{my_av_subnet_forward.1} parent=1 // pred_check_branch
      %1556 = sbr.rel (0) target = $region88
    $region87: #{my_av_subnet_forward.1} parent=1 // pred_region
      %1557 = dma.done [#allocation4], 256
    $region88: #{my_av_subnet_forward.1} parent=1 // pred_fallthru
      _
    %1558 = vsyncpa [#allocation4], 1

</llo_original>
